<compile_context>
chip_gen: v7x
topology: tpu7x:2x2x1
jax: 0.10.0
libtpu: 0.0.40
codegen_flags: <defaults>
</compile_context>

<pallas_src>
import jax
import jax.numpy as jnp
from jax.experimental import pallas as pl
from jax.experimental.pallas import tpu as pltpu

# ----------------------------- static dimensions -----------------------------
IMG = 32                  # input spatial size (required by the 16*5*5 flatten)
C0, C1, C2 = 3, 6, 16     # channels: input, conv1, conv2
K = 5                     # conv kernel size
OH1 = IMG - K + 1         # 28
PH1 = OH1 // 2            # 14
OH2 = PH1 - K + 1         # 10
PH2 = OH2 // 2            # 5
FC_IN = C2 * PH2 * PH2    # 400
FC1, FC2, NCLS = 120, 84, 4
NPAD = 128                # lane-dense padded width for the FC stack

MXU_DTYPE = jnp.float32   # set jnp.bfloat16 on v6e/v7x for ~2x MXU throughput


# ------------------------------- Pallas kernel -------------------------------


def _maxpool2x2(a, oh, c):
    """2x2/stride-2 max-pool of a (2*oh, 2*oh*c) value laid out as (h, w*c + ch)."""
    rows = jnp.maximum(
        jnp.concatenate([a[2 * i:2 * i + 1, :] for i in range(oh)], axis=0),
        jnp.concatenate([a[2 * i + 1:2 * i + 2, :] for i in range(oh)], axis=0))
    return jnp.maximum(
        jnp.concatenate([rows[:, (2 * j) * c:(2 * j) * c + c] for j in range(oh)], axis=1),
        jnp.concatenate([rows[:, (2 * j + 1) * c:(2 * j + 1) * c + c] for j in range(oh)], axis=1))


def _lenet_kernel(x_ref, w1_ref, b1_ref, w2_ref, b2_ref,
                  f1w_ref, f1b_ref, f2w_ref, f2b_ref, f3w_ref, f3b_ref,
                  o_ref):
    """Whole forward pass for one image; everything lives in VMEM."""
    x = x_ref[0]                                                   # (IMG, IMG*C0)

    # ---- conv1 + bias + ReLU: in-kernel im2col along H (row shifts) + band matmul
    xc = jnp.concatenate([x[ki:ki + OH1, :] for ki in range(K)], axis=1)    # (28, 480)
    h1 = jnp.dot(xc.astype(w1_ref.dtype), w1_ref[...],
                 preferred_element_type=jnp.float32) + b1_ref[...]          # (28, 168)
    h1 = jnp.maximum(h1, 0.0)

    p1 = _maxpool2x2(h1, PH1, C1)                                           # (14, 84)

    # ---- conv2 + bias + ReLU
    pc = jnp.concatenate([p1[ki:ki + OH2, :] for ki in range(K)], axis=1)   # (10, 420)
    h2 = jnp.dot(pc.astype(w2_ref.dtype), w2_ref[...],
                 preferred_element_type=jnp.float32) + b2_ref[...]          # (10, 160)
    h2 = jnp.maximum(h2, 0.0)

    p2 = _maxpool2x2(h2, PH2, C2)                                           # (5, 80)

    # ---- flatten (row-major over (h, w*C2+c)); torch's CHW order is folded into f1w
    feat = jnp.concatenate([p2[h:h + 1, :] for h in range(PH2)], axis=1)    # (1, 400)

    z = jnp.dot(feat.astype(f1w_ref.dtype), f1w_ref[...],
                preferred_element_type=jnp.float32) + f1b_ref[...]
    z = jnp.maximum(z, 0.0)
    z = jnp.dot(z.astype(f2w_ref.dtype), f2w_ref[...],
                preferred_element_type=jnp.float32) + f2b_ref[...]
    z = jnp.maximum(z, 0.0)
    z = jnp.dot(z.astype(f3w_ref.dtype), f3w_ref[...],
                preferred_element_type=jnp.float32) + f3b_ref[...]          # (1, 128)

    o_ref[0] = z.astype(o_ref.dtype)


# --------------------------- parameter preparation ---------------------------


def _conv_band_matrix(w_oihw, w_in, w_out):
    """Torch (OC, IC, KH, KW) conv weight -> banded (KH*w_in*IC, w_out*OC) matrix.

    Row index = ki*(w_in*IC) + wi*IC + ic  matches the kernel's concatenated
    row-shifted activation columns; col index = ow*OC + oc matches the (h, w*OC+oc)
    activation layout, so  act_cat @ band == valid stride-1 Conv2d (+later bias).
    """
    oc, ic, kh, kw = w_oihw.shape
    wt = jnp.transpose(w_oihw, (2, 3, 1, 0))                           # (kh, kw, ic, oc)
    kj = jnp.arange(w_in)[:, None] - jnp.arange(w_out)[None, :]        # (w_in, w_out)
    valid = (kj >= 0) & (kj < kw)
    g = wt[:, jnp.clip(kj, 0, kw - 1), :, :]                           # (kh, w_in, w_out, ic, oc)
    g = jnp.where(valid[None, :, :, None, None], g, 0.0)
    g = jnp.transpose(g, (0, 1, 3, 2, 4))                              # (kh, w_in, ic, w_out, oc)
    return g.reshape(kh * w_in * ic, w_out * oc)


def pack_params(params):
    """One-time transform of torch-layout params into kernel-ready operands."""
    f32 = jnp.float32
    w1 = _conv_band_matrix(params["conv1_w"].astype(f32), IMG, OH1).astype(MXU_DTYPE)
    w2 = _conv_band_matrix(params["conv2_w"].astype(f32), PH1, OH2).astype(MXU_DTYPE)
    b1 = jnp.tile(params["conv1_b"].astype(f32), OH1).reshape(1, OH1 * C1)
    b2 = jnp.tile(params["conv2_b"].astype(f32), OH2).reshape(1, OH2 * C2)

    # fc1: transpose, reorder rows from torch's CHW-flatten order to the kernel's
    # (h, w*C2 + c) flatten order, and pad output lanes to 128.
    perm = jnp.array(
        [(j % C2) * (PH2 * PH2) + (j // (PH2 * C2)) * PH2 + (j // C2) % PH2
         for j in range(FC_IN)], dtype=jnp.int32)
    f1w = jnp.pad(params["fc1_w"].astype(f32).T[perm], ((0, 0), (0, NPAD - FC1)))
    f2w = jnp.pad(params["fc2_w"].astype(f32).T, ((0, NPAD - FC1), (0, NPAD - FC2)))
    f3w = jnp.pad(params["fc3_w"].astype(f32).T, ((0, NPAD - FC2), (0, NPAD - NCLS)))
    f1b = jnp.pad(params["fc1_b"].astype(f32), (0, NPAD - FC1)).reshape(1, NPAD)
    f2b = jnp.pad(params["fc2_b"].astype(f32), (0, NPAD - FC2)).reshape(1, NPAD)
    f3b = jnp.pad(params["fc3_b"].astype(f32), (0, NPAD - NCLS)).reshape(1, NPAD)
    return {"w1": w1, "b1": b1, "w2": w2, "b2": b2,
            "f1w": f1w.astype(MXU_DTYPE), "f1b": f1b,
            "f2w": f2w.astype(MXU_DTYPE), "f2b": f2b,
            "f3w": f3w.astype(MXU_DTYPE), "f3b": f3b}


# --------------------------------- forward -----------------------------------


def forward(packed, x_nchw):
    """Fused LeNet forward.  x_nchw: (B, 3, 32, 32) -> logits (B, 4)."""
    B = x_nchw.shape[0]
    # NCHW -> per-image (H, W*C) layout; the only per-call relayout left.
    x = jnp.transpose(x_nchw, (0, 2, 3, 1)).reshape(B, IMG, IMG * C0).astype(MXU_DTYPE)

    weights = (packed["w1"], packed["b1"], packed["w2"], packed["b2"],
               packed["f1w"], packed["f1b"], packed["f2w"], packed["f2b"],
               packed["f3w"], packed["f3b"])
    weight_specs = [pl.BlockSpec(w.shape, lambda b: (0, 0)) for w in weights]

    out = pl.pallas_call(
        _lenet_kernel,
        out_shape=jax.ShapeDtypeStruct((B, 1, NPAD), jnp.float32),
        grid=(B,),
        in_specs=[pl.BlockSpec((1, IMG, IMG * C0), lambda b: (b, 0, 0))] + weight_specs,
        out_specs=pl.BlockSpec((1, 1, NPAD), lambda b: (b, 0, 0)),
        compiler_params=pltpu.CompilerParams(dimension_semantics=("parallel",)),
    )(x, *weights)
    return out[:, 0, :NCLS]


# ------------------------------- model setup ----------------------------------


def _uniform(key, shape, bound):
    return jax.random.uniform(key, shape, jnp.float32, -bound, bound)


def init_params(key):
    """Deterministic PyTorch-like (kaiming-uniform bound = 1/sqrt(fan_in)) init."""
    ks = jax.random.split(key, 10)

    def conv(kw_, kb_, oc, ic, k):
        bound = 1.0 / (ic * k * k) ** 0.5
        return _uniform(kw_, (oc, ic, k, k), bound), _uniform(kb_, (oc,), bound)

    def fc(kw_, kb_, out_f, in_f):
        bound = 1.0 / in_f ** 0.5
        return _uniform(kw_, (out_f, in_f), bound), _uniform(kb_, (out_f,), bound)

    p = {}
    p["conv1_w"], p["conv1_b"] = conv(ks[0], ks[1], C1, C0, K)
    p["conv2_w"], p["conv2_b"] = conv(ks[2], ks[3], C2, C1, K)
    p["fc1_w"], p["fc1_b"] = fc(ks[4], ks[5], FC1, FC_IN)
    p["fc2_w"], p["fc2_b"] = fc(ks[6], ks[7], FC2, FC1)
    p["fc3_w"], p["fc3_b"] = fc(ks[8], ks[9], NCLS, FC2)
    return p


def reference_forward(params, x):
    """Pure-XLA reference replicating the PyTorch module (validation only)."""
    def conv(x, w, b):
        dn = jax.lax.conv_dimension_numbers(x.shape, w.shape, ("NCHW", "OIHW", "NCHW"))
        y = jax.lax.conv_general_dilated(x, w, (1, 1), "VALID", dimension_numbers=dn)
        return jax.nn.relu(y + b[None, :, None, None])

    def pool(x):
        return jax.lax.reduce_window(x, -jnp.inf, jax.lax.max,
                                     (1, 1, 2, 2), (1, 1, 2, 2), "VALID")

    y = pool(conv(x, params["conv1_w"], params["conv1_b"]))
    y = pool(conv(y, params["conv2_w"], params["conv2_b"]))
    y = y.reshape(y.shape[0], -1)                      # torch's x.view(-1, 16*5*5)
    y = jax.nn.relu(y @ params["fc1_w"].T + params["fc1_b"])
    y = jax.nn.relu(y @ params["fc2_w"].T + params["fc2_b"])
    return y @ params["fc3_w"].T + params["fc3_b"]


if __name__ == "__main__":
    key = jax.random.PRNGKey(0)
    pkey, xkey = jax.random.split(key)
    params = init_params(pkey)
    packed = pack_params(params)          # one-time layout packing (hoisted plumbing)

    # Input must be 32x32 spatial so the flatten hits 16*5*5 = 400 features.
    x = jax.random.normal(xkey, (2, C0, IMG, IMG), dtype=jnp.float32)

    out = jax.jit(forward)(packed, x)
    out = jax.block_until_ready(out)
    assert out.shape == (2, NCLS), out.shape

    with jax.default_matmul_precision("highest"):
        ref = reference_forward(params, x)
    max_err = float(jnp.max(jnp.abs(out - ref)))
    assert jnp.allclose(out, ref, rtol=5e-2, atol=5e-2), f"max abs err {max_err}"

    print("KERNEL_OK")
</pallas_src>

<mosaic_0001>
module attributes {stable_mosaic.version = 11 : i64} {
  func.func @_lenet_kernel(%arg0: i32, %arg1: memref<1x32x96xf32, #tpu.memory_space<vmem>>, %arg2: memref<480x168xf32, #tpu.memory_space<vmem>>, %arg3: memref<1x168xf32, #tpu.memory_space<vmem>>, %arg4: memref<420x160xf32, #tpu.memory_space<vmem>>, %arg5: memref<1x160xf32, #tpu.memory_space<vmem>>, %arg6: memref<400x128xf32, #tpu.memory_space<vmem>>, %arg7: memref<1x128xf32, #tpu.memory_space<vmem>>, %arg8: memref<128x128xf32, #tpu.memory_space<vmem>>, %arg9: memref<1x128xf32, #tpu.memory_space<vmem>>, %arg10: memref<128x128xf32, #tpu.memory_space<vmem>>, %arg11: memref<1x128xf32, #tpu.memory_space<vmem>>, %arg12: memref<1x1x128xf32, #tpu.memory_space<vmem>>) attributes {dimension_semantics = [#tpu.dimension_semantics<parallel>], iteration_bounds = array<i64: 2>, scalar_prefetch = 0 : i64, scratch_operands = 0 : i64, tpu.core_type = #tpu.core_type<tc>, window_params = [{transform_indices = @transform_0, window_bounds = array<i64: 1, 32, 96>}, {pipeline_mode = #tpu.pipeline_mode<synchronous>, transform_indices = @transform_1, window_bounds = array<i64: 480, 168>}, {pipeline_mode = #tpu.pipeline_mode<synchronous>, transform_indices = @transform_2, window_bounds = array<i64: 1, 168>}, {pipeline_mode = #tpu.pipeline_mode<synchronous>, transform_indices = @transform_3, window_bounds = array<i64: 420, 160>}, {pipeline_mode = #tpu.pipeline_mode<synchronous>, transform_indices = @transform_4, window_bounds = array<i64: 1, 160>}, {pipeline_mode = #tpu.pipeline_mode<synchronous>, transform_indices = @transform_5, window_bounds = array<i64: 400, 128>}, {pipeline_mode = #tpu.pipeline_mode<synchronous>, transform_indices = @transform_6, window_bounds = array<i64: 1, 128>}, {pipeline_mode = #tpu.pipeline_mode<synchronous>, transform_indices = @transform_7, window_bounds = array<i64: 128, 128>}, {pipeline_mode = #tpu.pipeline_mode<synchronous>, transform_indices = @transform_8, window_bounds = array<i64: 1, 128>}, {pipeline_mode = #tpu.pipeline_mode<synchronous>, transform_indices = @transform_9, window_bounds = array<i64: 128, 128>}, {pipeline_mode = #tpu.pipeline_mode<synchronous>, transform_indices = @transform_10, window_bounds = array<i64: 1, 128>}, {transform_indices = @transform_11, window_bounds = array<i64: 1, 1, 128>}]} {
    %c0 = arith.constant 0 : index
    %c0_0 = arith.constant 0 : index
    %c0_1 = arith.constant 0 : index
    %0 = vector.load %arg1[%c0, %c0_0, %c0_1] : memref<1x32x96xf32, #tpu.memory_space<vmem>>, vector<1x32x96xf32>
    %1 = vector.shape_cast %0 : vector<1x32x96xf32> to vector<32x96xf32>
    %2 = vector.extract_strided_slice %1 {offsets = [0, 0], sizes = [28, 96], strides = [1, 1]} : vector<32x96xf32> to vector<28x96xf32>
    %3 = vector.extract_strided_slice %1 {offsets = [1, 0], sizes = [28, 96], strides = [1, 1]} : vector<32x96xf32> to vector<28x96xf32>
    %4 = vector.extract_strided_slice %1 {offsets = [2, 0], sizes = [28, 96], strides = [1, 1]} : vector<32x96xf32> to vector<28x96xf32>
    %5 = vector.extract_strided_slice %1 {offsets = [3, 0], sizes = [28, 96], strides = [1, 1]} : vector<32x96xf32> to vector<28x96xf32>
    %6 = vector.extract_strided_slice %1 {offsets = [4, 0], sizes = [28, 96], strides = [1, 1]} : vector<32x96xf32> to vector<28x96xf32>
    %7 = tpu.concatenate %2, %3, %4, %5, %6 in 1 : vector<28x96xf32>, vector<28x96xf32>, vector<28x96xf32>, vector<28x96xf32>, vector<28x96xf32> -> vector<28x480xf32>
    %c0_2 = arith.constant 0 : index
    %c0_3 = arith.constant 0 : index
    %8 = vector.load %arg2[%c0_2, %c0_3] : memref<480x168xf32, #tpu.memory_space<vmem>>, vector<480x168xf32>
    %cst = arith.constant dense<0.000000e+00> : vector<28x168xf32>
    %9 = tpu.matmul %7, %8, %cst {dimension_numbers = #tpu.dot_dimension_numbers<[1], [0], [0], [1], [0, 0, 1, 1], [], []>} : vector<28x480xf32>, vector<480x168xf32>, vector<28x168xf32> -> vector<28x168xf32>
    %c0_4 = arith.constant 0 : index
    %c0_5 = arith.constant 0 : index
    %10 = vector.load %arg3[%c0_4, %c0_5] : memref<1x168xf32, #tpu.memory_space<vmem>>, vector<1x168xf32>
    %11 = vector.broadcast %10 : vector<1x168xf32> to vector<28x168xf32>
    %12 = arith.addf %9, %11 : vector<28x168xf32>
    %cst_6 = arith.constant 0.000000e+00 : f32
    %13 = vector.broadcast %cst_6 : f32 to vector<28x168xf32>
    %14 = arith.maximumf %12, %13 : vector<28x168xf32>
    %15 = vector.extract_strided_slice %14 {offsets = [0, 0], sizes = [1, 168], strides = [1, 1]} : vector<28x168xf32> to vector<1x168xf32>
    %16 = vector.extract_strided_slice %14 {offsets = [2, 0], sizes = [1, 168], strides = [1, 1]} : vector<28x168xf32> to vector<1x168xf32>
    %17 = vector.extract_strided_slice %14 {offsets = [4, 0], sizes = [1, 168], strides = [1, 1]} : vector<28x168xf32> to vector<1x168xf32>
    %18 = vector.extract_strided_slice %14 {offsets = [6, 0], sizes = [1, 168], strides = [1, 1]} : vector<28x168xf32> to vector<1x168xf32>
    %19 = vector.extract_strided_slice %14 {offsets = [8, 0], sizes = [1, 168], strides = [1, 1]} : vector<28x168xf32> to vector<1x168xf32>
    %20 = vector.extract_strided_slice %14 {offsets = [10, 0], sizes = [1, 168], strides = [1, 1]} : vector<28x168xf32> to vector<1x168xf32>
    %21 = vector.extract_strided_slice %14 {offsets = [12, 0], sizes = [1, 168], strides = [1, 1]} : vector<28x168xf32> to vector<1x168xf32>
    %22 = vector.extract_strided_slice %14 {offsets = [14, 0], sizes = [1, 168], strides = [1, 1]} : vector<28x168xf32> to vector<1x168xf32>
    %23 = vector.extract_strided_slice %14 {offsets = [16, 0], sizes = [1, 168], strides = [1, 1]} : vector<28x168xf32> to vector<1x168xf32>
    %24 = vector.extract_strided_slice %14 {offsets = [18, 0], sizes = [1, 168], strides = [1, 1]} : vector<28x168xf32> to vector<1x168xf32>
    %25 = vector.extract_strided_slice %14 {offsets = [20, 0], sizes = [1, 168], strides = [1, 1]} : vector<28x168xf32> to vector<1x168xf32>
    %26 = vector.extract_strided_slice %14 {offsets = [22, 0], sizes = [1, 168], strides = [1, 1]} : vector<28x168xf32> to vector<1x168xf32>
    %27 = vector.extract_strided_slice %14 {offsets = [24, 0], sizes = [1, 168], strides = [1, 1]} : vector<28x168xf32> to vector<1x168xf32>
    %28 = vector.extract_strided_slice %14 {offsets = [26, 0], sizes = [1, 168], strides = [1, 1]} : vector<28x168xf32> to vector<1x168xf32>
    %29 = tpu.concatenate %15, %16, %17, %18, %19, %20, %21, %22, %23, %24, %25, %26, %27, %28 in 0 : vector<1x168xf32>, vector<1x168xf32>, vector<1x168xf32>, vector<1x168xf32>, vector<1x168xf32>, vector<1x168xf32>, vector<1x168xf32>, vector<1x168xf32>, vector<1x168xf32>, vector<1x168xf32>, vector<1x168xf32>, vector<1x168xf32>, vector<1x168xf32>, vector<1x168xf32> -> vector<14x168xf32>
    %30 = vector.extract_strided_slice %14 {offsets = [1, 0], sizes = [1, 168], strides = [1, 1]} : vector<28x168xf32> to vector<1x168xf32>
    %31 = vector.extract_strided_slice %14 {offsets = [3, 0], sizes = [1, 168], strides = [1, 1]} : vector<28x168xf32> to vector<1x168xf32>
    %32 = vector.extract_strided_slice %14 {offsets = [5, 0], sizes = [1, 168], strides = [1, 1]} : vector<28x168xf32> to vector<1x168xf32>
    %33 = vector.extract_strided_slice %14 {offsets = [7, 0], sizes = [1, 168], strides = [1, 1]} : vector<28x168xf32> to vector<1x168xf32>
    %34 = vector.extract_strided_slice %14 {offsets = [9, 0], sizes = [1, 168], strides = [1, 1]} : vector<28x168xf32> to vector<1x168xf32>
    %35 = vector.extract_strided_slice %14 {offsets = [11, 0], sizes = [1, 168], strides = [1, 1]} : vector<28x168xf32> to vector<1x168xf32>
    %36 = vector.extract_strided_slice %14 {offsets = [13, 0], sizes = [1, 168], strides = [1, 1]} : vector<28x168xf32> to vector<1x168xf32>
    %37 = vector.extract_strided_slice %14 {offsets = [15, 0], sizes = [1, 168], strides = [1, 1]} : vector<28x168xf32> to vector<1x168xf32>
    %38 = vector.extract_strided_slice %14 {offsets = [17, 0], sizes = [1, 168], strides = [1, 1]} : vector<28x168xf32> to vector<1x168xf32>
    %39 = vector.extract_strided_slice %14 {offsets = [19, 0], sizes = [1, 168], strides = [1, 1]} : vector<28x168xf32> to vector<1x168xf32>
    %40 = vector.extract_strided_slice %14 {offsets = [21, 0], sizes = [1, 168], strides = [1, 1]} : vector<28x168xf32> to vector<1x168xf32>
    %41 = vector.extract_strided_slice %14 {offsets = [23, 0], sizes = [1, 168], strides = [1, 1]} : vector<28x168xf32> to vector<1x168xf32>
    %42 = vector.extract_strided_slice %14 {offsets = [25, 0], sizes = [1, 168], strides = [1, 1]} : vector<28x168xf32> to vector<1x168xf32>
    %43 = vector.extract_strided_slice %14 {offsets = [27, 0], sizes = [1, 168], strides = [1, 1]} : vector<28x168xf32> to vector<1x168xf32>
    %44 = tpu.concatenate %30, %31, %32, %33, %34, %35, %36, %37, %38, %39, %40, %41, %42, %43 in 0 : vector<1x168xf32>, vector<1x168xf32>, vector<1x168xf32>, vector<1x168xf32>, vector<1x168xf32>, vector<1x168xf32>, vector<1x168xf32>, vector<1x168xf32>, vector<1x168xf32>, vector<1x168xf32>, vector<1x168xf32>, vector<1x168xf32>, vector<1x168xf32>, vector<1x168xf32> -> vector<14x168xf32>
    %45 = arith.maximumf %29, %44 : vector<14x168xf32>
    %46 = vector.extract_strided_slice %45 {offsets = [0, 0], sizes = [14, 6], strides = [1, 1]} : vector<14x168xf32> to vector<14x6xf32>
    %47 = vector.extract_strided_slice %45 {offsets = [0, 12], sizes = [14, 6], strides = [1, 1]} : vector<14x168xf32> to vector<14x6xf32>
    %48 = vector.extract_strided_slice %45 {offsets = [0, 24], sizes = [14, 6], strides = [1, 1]} : vector<14x168xf32> to vector<14x6xf32>
    %49 = vector.extract_strided_slice %45 {offsets = [0, 36], sizes = [14, 6], strides = [1, 1]} : vector<14x168xf32> to vector<14x6xf32>
    %50 = vector.extract_strided_slice %45 {offsets = [0, 48], sizes = [14, 6], strides = [1, 1]} : vector<14x168xf32> to vector<14x6xf32>
    %51 = vector.extract_strided_slice %45 {offsets = [0, 60], sizes = [14, 6], strides = [1, 1]} : vector<14x168xf32> to vector<14x6xf32>
    %52 = vector.extract_strided_slice %45 {offsets = [0, 72], sizes = [14, 6], strides = [1, 1]} : vector<14x168xf32> to vector<14x6xf32>
    %53 = vector.extract_strided_slice %45 {offsets = [0, 84], sizes = [14, 6], strides = [1, 1]} : vector<14x168xf32> to vector<14x6xf32>
    %54 = vector.extract_strided_slice %45 {offsets = [0, 96], sizes = [14, 6], strides = [1, 1]} : vector<14x168xf32> to vector<14x6xf32>
    %55 = vector.extract_strided_slice %45 {offsets = [0, 108], sizes = [14, 6], strides = [1, 1]} : vector<14x168xf32> to vector<14x6xf32>
    %56 = vector.extract_strided_slice %45 {offsets = [0, 120], sizes = [14, 6], strides = [1, 1]} : vector<14x168xf32> to vector<14x6xf32>
    %57 = vector.extract_strided_slice %45 {offsets = [0, 132], sizes = [14, 6], strides = [1, 1]} : vector<14x168xf32> to vector<14x6xf32>
    %58 = vector.extract_strided_slice %45 {offsets = [0, 144], sizes = [14, 6], strides = [1, 1]} : vector<14x168xf32> to vector<14x6xf32>
    %59 = vector.extract_strided_slice %45 {offsets = [0, 156], sizes = [14, 6], strides = [1, 1]} : vector<14x168xf32> to vector<14x6xf32>
    %60 = tpu.concatenate %46, %47, %48, %49, %50, %51, %52, %53, %54, %55, %56, %57, %58, %59 in 1 : vector<14x6xf32>, vector<14x6xf32>, vector<14x6xf32>, vector<14x6xf32>, vector<14x6xf32>, vector<14x6xf32>, vector<14x6xf32>, vector<14x6xf32>, vector<14x6xf32>, vector<14x6xf32>, vector<14x6xf32>, vector<14x6xf32>, vector<14x6xf32>, vector<14x6xf32> -> vector<14x84xf32>
    %61 = vector.extract_strided_slice %45 {offsets = [0, 6], sizes = [14, 6], strides = [1, 1]} : vector<14x168xf32> to vector<14x6xf32>
    %62 = vector.extract_strided_slice %45 {offsets = [0, 18], sizes = [14, 6], strides = [1, 1]} : vector<14x168xf32> to vector<14x6xf32>
    %63 = vector.extract_strided_slice %45 {offsets = [0, 30], sizes = [14, 6], strides = [1, 1]} : vector<14x168xf32> to vector<14x6xf32>
    %64 = vector.extract_strided_slice %45 {offsets = [0, 42], sizes = [14, 6], strides = [1, 1]} : vector<14x168xf32> to vector<14x6xf32>
    %65 = vector.extract_strided_slice %45 {offsets = [0, 54], sizes = [14, 6], strides = [1, 1]} : vector<14x168xf32> to vector<14x6xf32>
    %66 = vector.extract_strided_slice %45 {offsets = [0, 66], sizes = [14, 6], strides = [1, 1]} : vector<14x168xf32> to vector<14x6xf32>
    %67 = vector.extract_strided_slice %45 {offsets = [0, 78], sizes = [14, 6], strides = [1, 1]} : vector<14x168xf32> to vector<14x6xf32>
    %68 = vector.extract_strided_slice %45 {offsets = [0, 90], sizes = [14, 6], strides = [1, 1]} : vector<14x168xf32> to vector<14x6xf32>
    %69 = vector.extract_strided_slice %45 {offsets = [0, 102], sizes = [14, 6], strides = [1, 1]} : vector<14x168xf32> to vector<14x6xf32>
    %70 = vector.extract_strided_slice %45 {offsets = [0, 114], sizes = [14, 6], strides = [1, 1]} : vector<14x168xf32> to vector<14x6xf32>
    %71 = vector.extract_strided_slice %45 {offsets = [0, 126], sizes = [14, 6], strides = [1, 1]} : vector<14x168xf32> to vector<14x6xf32>
    %72 = vector.extract_strided_slice %45 {offsets = [0, 138], sizes = [14, 6], strides = [1, 1]} : vector<14x168xf32> to vector<14x6xf32>
    %73 = vector.extract_strided_slice %45 {offsets = [0, 150], sizes = [14, 6], strides = [1, 1]} : vector<14x168xf32> to vector<14x6xf32>
    %74 = vector.extract_strided_slice %45 {offsets = [0, 162], sizes = [14, 6], strides = [1, 1]} : vector<14x168xf32> to vector<14x6xf32>
    %75 = tpu.concatenate %61, %62, %63, %64, %65, %66, %67, %68, %69, %70, %71, %72, %73, %74 in 1 : vector<14x6xf32>, vector<14x6xf32>, vector<14x6xf32>, vector<14x6xf32>, vector<14x6xf32>, vector<14x6xf32>, vector<14x6xf32>, vector<14x6xf32>, vector<14x6xf32>, vector<14x6xf32>, vector<14x6xf32>, vector<14x6xf32>, vector<14x6xf32>, vector<14x6xf32> -> vector<14x84xf32>
    %76 = arith.maximumf %60, %75 : vector<14x84xf32>
    %77 = vector.extract_strided_slice %76 {offsets = [0, 0], sizes = [10, 84], strides = [1, 1]} : vector<14x84xf32> to vector<10x84xf32>
    %78 = vector.extract_strided_slice %76 {offsets = [1, 0], sizes = [10, 84], strides = [1, 1]} : vector<14x84xf32> to vector<10x84xf32>
    %79 = vector.extract_strided_slice %76 {offsets = [2, 0], sizes = [10, 84], strides = [1, 1]} : vector<14x84xf32> to vector<10x84xf32>
    %80 = vector.extract_strided_slice %76 {offsets = [3, 0], sizes = [10, 84], strides = [1, 1]} : vector<14x84xf32> to vector<10x84xf32>
    %81 = vector.extract_strided_slice %76 {offsets = [4, 0], sizes = [10, 84], strides = [1, 1]} : vector<14x84xf32> to vector<10x84xf32>
    %82 = tpu.concatenate %77, %78, %79, %80, %81 in 1 : vector<10x84xf32>, vector<10x84xf32>, vector<10x84xf32>, vector<10x84xf32>, vector<10x84xf32> -> vector<10x420xf32>
    %c0_7 = arith.constant 0 : index
    %c0_8 = arith.constant 0 : index
    %83 = vector.load %arg4[%c0_7, %c0_8] : memref<420x160xf32, #tpu.memory_space<vmem>>, vector<420x160xf32>
    %cst_9 = arith.constant dense<0.000000e+00> : vector<10x160xf32>
    %84 = tpu.matmul %82, %83, %cst_9 {dimension_numbers = #tpu.dot_dimension_numbers<[1], [0], [0], [1], [0, 0, 1, 1], [], []>} : vector<10x420xf32>, vector<420x160xf32>, vector<10x160xf32> -> vector<10x160xf32>
    %c0_10 = arith.constant 0 : index
    %c0_11 = arith.constant 0 : index
    %85 = vector.load %arg5[%c0_10, %c0_11] : memref<1x160xf32, #tpu.memory_space<vmem>>, vector<1x160xf32>
    %86 = vector.broadcast %85 : vector<1x160xf32> to vector<10x160xf32>
    %87 = arith.addf %84, %86 : vector<10x160xf32>
    %cst_12 = arith.constant 0.000000e+00 : f32
    %88 = vector.broadcast %cst_12 : f32 to vector<10x160xf32>
    %89 = arith.maximumf %87, %88 : vector<10x160xf32>
    %90 = vector.extract_strided_slice %89 {offsets = [0, 0], sizes = [1, 160], strides = [1, 1]} : vector<10x160xf32> to vector<1x160xf32>
    %91 = vector.extract_strided_slice %89 {offsets = [2, 0], sizes = [1, 160], strides = [1, 1]} : vector<10x160xf32> to vector<1x160xf32>
    %92 = vector.extract_strided_slice %89 {offsets = [4, 0], sizes = [1, 160], strides = [1, 1]} : vector<10x160xf32> to vector<1x160xf32>
    %93 = vector.extract_strided_slice %89 {offsets = [6, 0], sizes = [1, 160], strides = [1, 1]} : vector<10x160xf32> to vector<1x160xf32>
    %94 = vector.extract_strided_slice %89 {offsets = [8, 0], sizes = [1, 160], strides = [1, 1]} : vector<10x160xf32> to vector<1x160xf32>
    %95 = tpu.concatenate %90, %91, %92, %93, %94 in 0 : vector<1x160xf32>, vector<1x160xf32>, vector<1x160xf32>, vector<1x160xf32>, vector<1x160xf32> -> vector<5x160xf32>
    %96 = vector.extract_strided_slice %89 {offsets = [1, 0], sizes = [1, 160], strides = [1, 1]} : vector<10x160xf32> to vector<1x160xf32>
    %97 = vector.extract_strided_slice %89 {offsets = [3, 0], sizes = [1, 160], strides = [1, 1]} : vector<10x160xf32> to vector<1x160xf32>
    %98 = vector.extract_strided_slice %89 {offsets = [5, 0], sizes = [1, 160], strides = [1, 1]} : vector<10x160xf32> to vector<1x160xf32>
    %99 = vector.extract_strided_slice %89 {offsets = [7, 0], sizes = [1, 160], strides = [1, 1]} : vector<10x160xf32> to vector<1x160xf32>
    %100 = vector.extract_strided_slice %89 {offsets = [9, 0], sizes = [1, 160], strides = [1, 1]} : vector<10x160xf32> to vector<1x160xf32>
    %101 = tpu.concatenate %96, %97, %98, %99, %100 in 0 : vector<1x160xf32>, vector<1x160xf32>, vector<1x160xf32>, vector<1x160xf32>, vector<1x160xf32> -> vector<5x160xf32>
    %102 = arith.maximumf %95, %101 : vector<5x160xf32>
    %103 = vector.extract_strided_slice %102 {offsets = [0, 0], sizes = [5, 16], strides = [1, 1]} : vector<5x160xf32> to vector<5x16xf32>
    %104 = vector.extract_strided_slice %102 {offsets = [0, 32], sizes = [5, 16], strides = [1, 1]} : vector<5x160xf32> to vector<5x16xf32>
    %105 = vector.extract_strided_slice %102 {offsets = [0, 64], sizes = [5, 16], strides = [1, 1]} : vector<5x160xf32> to vector<5x16xf32>
    %106 = vector.extract_strided_slice %102 {offsets = [0, 96], sizes = [5, 16], strides = [1, 1]} : vector<5x160xf32> to vector<5x16xf32>
    %107 = vector.extract_strided_slice %102 {offsets = [0, 128], sizes = [5, 16], strides = [1, 1]} : vector<5x160xf32> to vector<5x16xf32>
    %108 = tpu.concatenate %103, %104, %105, %106, %107 in 1 : vector<5x16xf32>, vector<5x16xf32>, vector<5x16xf32>, vector<5x16xf32>, vector<5x16xf32> -> vector<5x80xf32>
    %109 = vector.extract_strided_slice %102 {offsets = [0, 16], sizes = [5, 16], strides = [1, 1]} : vector<5x160xf32> to vector<5x16xf32>
    %110 = vector.extract_strided_slice %102 {offsets = [0, 48], sizes = [5, 16], strides = [1, 1]} : vector<5x160xf32> to vector<5x16xf32>
    %111 = vector.extract_strided_slice %102 {offsets = [0, 80], sizes = [5, 16], strides = [1, 1]} : vector<5x160xf32> to vector<5x16xf32>
    %112 = vector.extract_strided_slice %102 {offsets = [0, 112], sizes = [5, 16], strides = [1, 1]} : vector<5x160xf32> to vector<5x16xf32>
    %113 = vector.extract_strided_slice %102 {offsets = [0, 144], sizes = [5, 16], strides = [1, 1]} : vector<5x160xf32> to vector<5x16xf32>
    %114 = tpu.concatenate %109, %110, %111, %112, %113 in 1 : vector<5x16xf32>, vector<5x16xf32>, vector<5x16xf32>, vector<5x16xf32>, vector<5x16xf32> -> vector<5x80xf32>
    %115 = arith.maximumf %108, %114 : vector<5x80xf32>
    %116 = vector.extract_strided_slice %115 {offsets = [0, 0], sizes = [1, 80], strides = [1, 1]} : vector<5x80xf32> to vector<1x80xf32>
    %117 = vector.extract_strided_slice %115 {offsets = [1, 0], sizes = [1, 80], strides = [1, 1]} : vector<5x80xf32> to vector<1x80xf32>
    %118 = vector.extract_strided_slice %115 {offsets = [2, 0], sizes = [1, 80], strides = [1, 1]} : vector<5x80xf32> to vector<1x80xf32>
    %119 = vector.extract_strided_slice %115 {offsets = [3, 0], sizes = [1, 80], strides = [1, 1]} : vector<5x80xf32> to vector<1x80xf32>
    %120 = vector.extract_strided_slice %115 {offsets = [4, 0], sizes = [1, 80], strides = [1, 1]} : vector<5x80xf32> to vector<1x80xf32>
    %121 = tpu.concatenate %116, %117, %118, %119, %120 in 1 : vector<1x80xf32>, vector<1x80xf32>, vector<1x80xf32>, vector<1x80xf32>, vector<1x80xf32> -> vector<1x400xf32>
    %c0_13 = arith.constant 0 : index
    %c0_14 = arith.constant 0 : index
    %122 = vector.load %arg6[%c0_13, %c0_14] : memref<400x128xf32, #tpu.memory_space<vmem>>, vector<400x128xf32>
    %cst_15 = arith.constant dense<0.000000e+00> : vector<1x128xf32>
    %123 = tpu.matmul %121, %122, %cst_15 {dimension_numbers = #tpu.dot_dimension_numbers<[1], [0], [0], [1], [0, 0, 1, 1], [], []>} : vector<1x400xf32>, vector<400x128xf32>, vector<1x128xf32> -> vector<1x128xf32>
    %c0_16 = arith.constant 0 : index
    %c0_17 = arith.constant 0 : index
    %124 = vector.load %arg7[%c0_16, %c0_17] : memref<1x128xf32, #tpu.memory_space<vmem>>, vector<1x128xf32>
    %125 = arith.addf %123, %124 : vector<1x128xf32>
    %cst_18 = arith.constant 0.000000e+00 : f32
    %126 = vector.broadcast %cst_18 : f32 to vector<1x128xf32>
    %127 = arith.maximumf %125, %126 : vector<1x128xf32>
    %c0_19 = arith.constant 0 : index
    %c0_20 = arith.constant 0 : index
    %128 = vector.load %arg8[%c0_19, %c0_20] : memref<128x128xf32, #tpu.memory_space<vmem>>, vector<128x128xf32>
    %cst_21 = arith.constant dense<0.000000e+00> : vector<1x128xf32>
    %129 = tpu.matmul %127, %128, %cst_21 {dimension_numbers = #tpu.dot_dimension_numbers<[1], [0], [0], [1], [0, 0, 1, 1], [], []>} : vector<1x128xf32>, vector<128x128xf32>, vector<1x128xf32> -> vector<1x128xf32>
    %c0_22 = arith.constant 0 : index
    %c0_23 = arith.constant 0 : index
    %130 = vector.load %arg9[%c0_22, %c0_23] : memref<1x128xf32, #tpu.memory_space<vmem>>, vector<1x128xf32>
    %131 = arith.addf %129, %130 : vector<1x128xf32>
    %cst_24 = arith.constant 0.000000e+00 : f32
    %132 = vector.broadcast %cst_24 : f32 to vector<1x128xf32>
    %133 = arith.maximumf %131, %132 : vector<1x128xf32>
    %c0_25 = arith.constant 0 : index
    %c0_26 = arith.constant 0 : index
    %134 = vector.load %arg10[%c0_25, %c0_26] : memref<128x128xf32, #tpu.memory_space<vmem>>, vector<128x128xf32>
    %cst_27 = arith.constant dense<0.000000e+00> : vector<1x128xf32>
    %135 = tpu.matmul %133, %134, %cst_27 {dimension_numbers = #tpu.dot_dimension_numbers<[1], [0], [0], [1], [0, 0, 1, 1], [], []>} : vector<1x128xf32>, vector<128x128xf32>, vector<1x128xf32> -> vector<1x128xf32>
    %c0_28 = arith.constant 0 : index
    %c0_29 = arith.constant 0 : index
    %136 = vector.load %arg11[%c0_28, %c0_29] : memref<1x128xf32, #tpu.memory_space<vmem>>, vector<1x128xf32>
    %137 = arith.addf %135, %136 : vector<1x128xf32>
    %c0_30 = arith.constant 0 : index
    %c0_31 = arith.constant 0 : index
    %c0_32 = arith.constant 0 : index
    %138 = vector.load %arg12[%c0_30, %c0_31, %c0_32] : memref<1x1x128xf32, #tpu.memory_space<vmem>>, vector<1x1x128xf32>
    %139 = vector.shape_cast %138 : vector<1x1x128xf32> to vector<1x128xf32>
    %140 = vector.shape_cast %137 : vector<1x128xf32> to vector<1x1x128xf32>
    tpu.vector_store %arg12[%c0_30, %c0_31, %c0_32], %140 {strides = array<i32>} : memref<1x1x128xf32, #tpu.memory_space<vmem>>, vector<1x1x128xf32>,
    return
  }
  func.func @transform_0(%arg0: i32) -> (i32, i32, i32) {
    %c0_i32 = arith.constant 0 : i32
    %c0_i32_0 = arith.constant 0 : i32
    %c0_i32_1 = arith.constant 0 : i32
    return %arg0, %c0_i32, %c0_i32_0 : i32, i32, i32
  }
  func.func @transform_1(%arg0: i32) -> (i32, i32) {
    %c0_i32 = arith.constant 0 : i32
    %c0_i32_0 = arith.constant 0 : i32
    %c0_i32_1 = arith.constant 0 : i32
    return %c0_i32, %c0_i32_0 : i32, i32
  }
  func.func @transform_2(%arg0: i32) -> (i32, i32) {
    %c0_i32 = arith.constant 0 : i32
    %c0_i32_0 = arith.constant 0 : i32
    %c0_i32_1 = arith.constant 0 : i32
    return %c0_i32, %c0_i32_0 : i32, i32
  }
  func.func @transform_3(%arg0: i32) -> (i32, i32) {
    %c0_i32 = arith.constant 0 : i32
    %c0_i32_0 = arith.constant 0 : i32
    %c0_i32_1 = arith.constant 0 : i32
    return %c0_i32, %c0_i32_0 : i32, i32
  }
  func.func @transform_4(%arg0: i32) -> (i32, i32) {
    %c0_i32 = arith.constant 0 : i32
    %c0_i32_0 = arith.constant 0 : i32
    %c0_i32_1 = arith.constant 0 : i32
    return %c0_i32, %c0_i32_0 : i32, i32
  }
  func.func @transform_5(%arg0: i32) -> (i32, i32) {
    %c0_i32 = arith.constant 0 : i32
    %c0_i32_0 = arith.constant 0 : i32
    %c0_i32_1 = arith.constant 0 : i32
    return %c0_i32, %c0_i32_0 : i32, i32
  }
  func.func @transform_6(%arg0: i32) -> (i32, i32) {
    %c0_i32 = arith.constant 0 : i32
    %c0_i32_0 = arith.constant 0 : i32
    %c0_i32_1 = arith.constant 0 : i32
    return %c0_i32, %c0_i32_0 : i32, i32
  }
  func.func @transform_7(%arg0: i32) -> (i32, i32) {
    %c0_i32 = arith.constant 0 : i32
    %c0_i32_0 = arith.constant 0 : i32
    %c0_i32_1 = arith.constant 0 : i32
    return %c0_i32, %c0_i32_0 : i32, i32
  }
  func.func @transform_8(%arg0: i32) -> (i32, i32) {
    %c0_i32 = arith.constant 0 : i32
    %c0_i32_0 = arith.constant 0 : i32
    %c0_i32_1 = arith.constant 0 : i32
    return %c0_i32, %c0_i32_0 : i32, i32
  }
  func.func @transform_9(%arg0: i32) -> (i32, i32) {
    %c0_i32 = arith.constant 0 : i32
    %c0_i32_0 = arith.constant 0 : i32
    %c0_i32_1 = arith.constant 0 : i32
    return %c0_i32, %c0_i32_0 : i32, i32
  }
  func.func @transform_10(%arg0: i32) -> (i32, i32) {
    %c0_i32 = arith.constant 0 : i32
    %c0_i32_0 = arith.constant 0 : i32
    %c0_i32_1 = arith.constant 0 : i32
    return %c0_i32, %c0_i32_0 : i32, i32
  }
  func.func @transform_11(%arg0: i32) -> (i32, i32, i32) {
    %c0_i32 = arith.constant 0 : i32
    %c0_i32_0 = arith.constant 0 : i32
    %c0_i32_1 = arith.constant 0 : i32
    return %arg0, %c0_i32, %c0_i32_0 : i32, i32, i32
  }
}

</mosaic_0001>

<llo_original>
// kernel: forward.1
$region0: #{forward.1}
  #allocation0 [shape = 'u32[]', space=smem, size = 0x4, offset = 0x4, fixed_abs, tag = 'smem constant byte address 0x4 - core index']
  #allocation1 [shape = 'u32[144,128]{1,0:T(1,128)}', space=vmem, size = 0x12000, scoped, tag = 'internal scratch']
  %s0 = inlined_call_operand.vmem [shape: f32[2,32,96], index: 0, kind: input, shape index: {}]
  %s1 = inlined_call_operand.vmem [shape: f32[480,168], index: 1, kind: input, shape index: {}]
  %s2 = inlined_call_operand.vmem [shape: f32[1,168], index: 2, kind: input, shape index: {}]
  %s3 = inlined_call_operand.vmem [shape: f32[420,160], index: 3, kind: input, shape index: {}]
  %s4 = inlined_call_operand.vmem [shape: f32[1,160], index: 4, kind: input, shape index: {}]
  %s5 = inlined_call_operand.vmem [shape: f32[400,128], index: 5, kind: input, shape index: {}]
  %s6 = inlined_call_operand.vmem [shape: f32[1,128], index: 6, kind: input, shape index: {}]
  %s7 = inlined_call_operand.vmem [shape: f32[128,128], index: 7, kind: input, shape index: {}]
  %s8 = inlined_call_operand.vmem [shape: f32[1,128], index: 8, kind: input, shape index: {}]
  %s9 = inlined_call_operand.vmem [shape: f32[128,128], index: 9, kind: input, shape index: {}]
  %s10 = inlined_call_operand.vmem [shape: f32[1,128], index: 10, kind: input, shape index: {}]
  %s11 = inlined_call_operand.hbm [shape: f32[2,1,128], index: 11, kind: output, shape index: {}]
  %s12 = sld [smem:[#allocation0]]
  $region77: #{forward.1} parent=0
    _
  %s14 = ssub.s32 1, %s12
  %s15 = scalar_select 0, %s14, %s12
  $region1: #{forward.1} parent=0
    #allocation2 [shape = 'u8[1024]{0}', space=vmem, size = 0x400, scoped, tag = 'output window, operand 0']
    #allocation3 [shape = 's32[2]{0}', space=sflag, size = 0x8, scoped, tag = 'scoped memory for forward.1']
    %16 = vsyncpa [#allocation3], 0
    %s17 = scalar_lea.sflag [#allocation3], 1
    %18 = vsyncpa %s17, 0
    loop: start=0, step=1, limit=4
    $region2: #{forward.1} parent=1 // loop_pre_header
      _
    $region3: #{forward.1} parent=1 // loop_header
      %s20 = sphi 0, %s24
      %p21 = scmp.ge.s32.totalorder %s20, 4
      %s30 = sphi 0, %s32
      %s33 = sphi 0, %s30
      %s34 = sphi 0, %s33
      %s50 = sphi 0, %s34
      %s54 = sphi 0, %s54
      %s56 = sphi 0, %s54
      %s57 = sphi 0, %s56
      %s71 = sphi 0, %s57
      %s75 = sphi 0, %s75
      %s77 = sphi 0, %s75
      %s78 = sphi 0, %s77
      %s92 = sphi 0, %s78
      %s96 = sphi 0, %s96
      %s98 = sphi 0, %s96
      %s99 = sphi 0, %s98
      %s113 = sphi 0, %s99
      %s117 = sphi 0, %s117
      %s119 = sphi 0, %s117
      %s120 = sphi 0, %s119
      %s134 = sphi 0, %s120
      %s138 = sphi 0, %s138
      %s140 = sphi 0, %s138
      %s141 = sphi 0, %s140
      %s155 = sphi 0, %s141
      %s159 = sphi 0, %s159
      %s161 = sphi 0, %s159
      %s162 = sphi 0, %s161
      %s176 = sphi 0, %s162
      %s180 = sphi 0, %s180
      %s182 = sphi 0, %s180
      %s183 = sphi 0, %s182
      %s197 = sphi 0, %s183
      %s201 = sphi 0, %s201
      %s203 = sphi 0, %s201
      %s204 = sphi 0, %s203
      %s218 = sphi 0, %s204
      %s222 = sphi 0, %s222
      %s224 = sphi 0, %s222
      %s225 = sphi 0, %s224
      %s239 = sphi 0, %s225
      %s243 = sphi 0, %s243
      %s245 = sphi 0, %s243
      %s246 = sphi 0, %s245
      %s260 = sphi 0, %s246
      %s266 = sphi 0, %s268
      %s269 = sphi 0, %s266
      %s270 = sphi 0, %s269
      %s286 = sphi 0, %s270
    $region4: #{forward.1} parent=1 // loop_header_branch
      %23 = sbr.rel (%p21) target = $region8
    $region5: #{forward.1} parent=1 // loop_body
      %s25 = ssub.s32 %s20, 1
      %s26 = ssub.s32 %s20, 2
      %s27 = sadd.s32 %s20, 1
      %s28 = ssub.s32 %s20, %s27
      %p29 = scmp.eq.s32.totalorder %s28, 0
      %s31 = sadd.s32 %s30, 1
      %s32 = scalar_select %p29, %s30, %s31
      %p35 = pneg %p29
      %p36 = scmp.eq.s32.totalorder %s20, 1
      %p37 = por %p35, %p36
      %p38 = scmp.ne.s32.totalorder %s30, %s33
      %p39 = scmp.eq.s32.totalorder %s20, 0
      %p40 = por %p38, %p39
      %p41 = scmp.ne.s32.totalorder %s30, %s33
      %p42 = scmp.eq.s32.totalorder %s25, 1
      %p43 = por %p41, %p42
      %p44 = scmp.ne.s32.totalorder %s33, %s34
      %p45 = scmp.eq.s32.totalorder %s25, 0
      %p46 = por %p44, %p45
      %p47 = scmp.ne.s32.totalorder %s33, %s34
      %p48 = scmp.eq.s32.totalorder %s26, 1
      %p49 = por %p47, %p48
      %p51 = scmp.ne.s32.totalorder %s34, %s50
      %p52 = scmp.eq.s32.totalorder %s26, 0
      %p53 = por %p51, %p52
      %s55 = sadd.s32 %s54, 1
      %p58 = scmp.eq.s32.totalorder %s20, 1
      %p59 = scmp.ne.s32.totalorder %s54, %s56
      %p60 = scmp.eq.s32.totalorder %s20, 0
      %p61 = por %p59, %p60
      %p62 = scmp.ne.s32.totalorder %s54, %s56
      %p63 = scmp.eq.s32.totalorder %s25, 1
      %p64 = por %p62, %p63
      %p65 = scmp.ne.s32.totalorder %s56, %s57
      %p66 = scmp.eq.s32.totalorder %s25, 0
      %p67 = por %p65, %p66
      %p68 = scmp.ne.s32.totalorder %s56, %s57
      %p69 = scmp.eq.s32.totalorder %s26, 1
      %p70 = por %p68, %p69
      %p72 = scmp.ne.s32.totalorder %s57, %s71
      %p73 = scmp.eq.s32.totalorder %s26, 0
      %p74 = por %p72, %p73
      %s76 = sadd.s32 %s75, 1
      %p79 = scmp.eq.s32.totalorder %s20, 1
      %p80 = scmp.ne.s32.totalorder %s75, %s77
      %p81 = scmp.eq.s32.totalorder %s20, 0
      %p82 = por %p80, %p81
      %p83 = scmp.ne.s32.totalorder %s75, %s77
      %p84 = scmp.eq.s32.totalorder %s25, 1
      %p85 = por %p83, %p84
      %p86 = scmp.ne.s32.totalorder %s77, %s78
      %p87 = scmp.eq.s32.totalorder %s25, 0
      %p88 = por %p86, %p87
      %p89 = scmp.ne.s32.totalorder %s77, %s78
      %p90 = scmp.eq.s32.totalorder %s26, 1
      %p91 = por %p89, %p90
      %p93 = scmp.ne.s32.totalorder %s78, %s92
      %p94 = scmp.eq.s32.totalorder %s26, 0
      %p95 = por %p93, %p94
      %s97 = sadd.s32 %s96, 1
      %p100 = scmp.eq.s32.totalorder %s20, 1
      %p101 = scmp.ne.s32.totalorder %s96, %s98
      %p102 = scmp.eq.s32.totalorder %s20, 0
      %p103 = por %p101, %p102
      %p104 = scmp.ne.s32.totalorder %s96, %s98
      %p105 = scmp.eq.s32.totalorder %s25, 1
      %p106 = por %p104, %p105
      %p107 = scmp.ne.s32.totalorder %s98, %s99
      %p108 = scmp.eq.s32.totalorder %s25, 0
      %p109 = por %p107, %p108
      %p110 = scmp.ne.s32.totalorder %s98, %s99
      %p111 = scmp.eq.s32.totalorder %s26, 1
      %p112 = por %p110, %p111
      %p114 = scmp.ne.s32.totalorder %s99, %s113
      %p115 = scmp.eq.s32.totalorder %s26, 0
      %p116 = por %p114, %p115
      %s118 = sadd.s32 %s117, 1
      %p121 = scmp.eq.s32.totalorder %s20, 1
      %p122 = scmp.ne.s32.totalorder %s117, %s119
      %p123 = scmp.eq.s32.totalorder %s20, 0
      %p124 = por %p122, %p123
      %p125 = scmp.ne.s32.totalorder %s117, %s119
      %p126 = scmp.eq.s32.totalorder %s25, 1
      %p127 = por %p125, %p126
      %p128 = scmp.ne.s32.totalorder %s119, %s120
      %p129 = scmp.eq.s32.totalorder %s25, 0
      %p130 = por %p128, %p129
      %p131 = scmp.ne.s32.totalorder %s119, %s120
      %p132 = scmp.eq.s32.totalorder %s26, 1
      %p133 = por %p131, %p132
      %p135 = scmp.ne.s32.totalorder %s120, %s134
      %p136 = scmp.eq.s32.totalorder %s26, 0
      %p137 = por %p135, %p136
      %s139 = sadd.s32 %s138, 1
      %p142 = scmp.eq.s32.totalorder %s20, 1
      %p143 = scmp.ne.s32.totalorder %s138, %s140
      %p144 = scmp.eq.s32.totalorder %s20, 0
      %p145 = por %p143, %p144
      %p146 = scmp.ne.s32.totalorder %s138, %s140
      %p147 = scmp.eq.s32.totalorder %s25, 1
      %p148 = por %p146, %p147
      %p149 = scmp.ne.s32.totalorder %s140, %s141
      %p150 = scmp.eq.s32.totalorder %s25, 0
      %p151 = por %p149, %p150
      %p152 = scmp.ne.s32.totalorder %s140, %s141
      %p153 = scmp.eq.s32.totalorder %s26, 1
      %p154 = por %p152, %p153
      %p156 = scmp.ne.s32.totalorder %s141, %s155
      %p157 = scmp.eq.s32.totalorder %s26, 0
      %p158 = por %p156, %p157
      %s160 = sadd.s32 %s159, 1
      %p163 = scmp.eq.s32.totalorder %s20, 1
      %p164 = scmp.ne.s32.totalorder %s159, %s161
      %p165 = scmp.eq.s32.totalorder %s20, 0
      %p166 = por %p164, %p165
      %p167 = scmp.ne.s32.totalorder %s159, %s161
      %p168 = scmp.eq.s32.totalorder %s25, 1
      %p169 = por %p167, %p168
      %p170 = scmp.ne.s32.totalorder %s161, %s162
      %p171 = scmp.eq.s32.totalorder %s25, 0
      %p172 = por %p170, %p171
      %p173 = scmp.ne.s32.totalorder %s161, %s162
      %p174 = scmp.eq.s32.totalorder %s26, 1
      %p175 = por %p173, %p174
      %p177 = scmp.ne.s32.totalorder %s162, %s176
      %p178 = scmp.eq.s32.totalorder %s26, 0
      %p179 = por %p177, %p178
      %s181 = sadd.s32 %s180, 1
      %p184 = scmp.eq.s32.totalorder %s20, 1
      %p185 = scmp.ne.s32.totalorder %s180, %s182
      %p186 = scmp.eq.s32.totalorder %s20, 0
      %p187 = por %p185, %p186
      %p188 = scmp.ne.s32.totalorder %s180, %s182
      %p189 = scmp.eq.s32.totalorder %s25, 1
      %p190 = por %p188, %p189
      %p191 = scmp.ne.s32.totalorder %s182, %s183
      %p192 = scmp.eq.s32.totalorder %s25, 0
      %p193 = por %p191, %p192
      %p194 = scmp.ne.s32.totalorder %s182, %s183
      %p195 = scmp.eq.s32.totalorder %s26, 1
      %p196 = por %p194, %p195
      %p198 = scmp.ne.s32.totalorder %s183, %s197
      %p199 = scmp.eq.s32.totalorder %s26, 0
      %p200 = por %p198, %p199
      %s202 = sadd.s32 %s201, 1
      %p205 = scmp.eq.s32.totalorder %s20, 1
      %p206 = scmp.ne.s32.totalorder %s201, %s203
      %p207 = scmp.eq.s32.totalorder %s20, 0
      %p208 = por %p206, %p207
      %p209 = scmp.ne.s32.totalorder %s201, %s203
      %p210 = scmp.eq.s32.totalorder %s25, 1
      %p211 = por %p209, %p210
      %p212 = scmp.ne.s32.totalorder %s203, %s204
      %p213 = scmp.eq.s32.totalorder %s25, 0
      %p214 = por %p212, %p213
      %p215 = scmp.ne.s32.totalorder %s203, %s204
      %p216 = scmp.eq.s32.totalorder %s26, 1
      %p217 = por %p215, %p216
      %p219 = scmp.ne.s32.totalorder %s204, %s218
      %p220 = scmp.eq.s32.totalorder %s26, 0
      %p221 = por %p219, %p220
      %s223 = sadd.s32 %s222, 1
      %p226 = scmp.eq.s32.totalorder %s20, 1
      %p227 = scmp.ne.s32.totalorder %s222, %s224
      %p228 = scmp.eq.s32.totalorder %s20, 0
      %p229 = por %p227, %p228
      %p230 = scmp.ne.s32.totalorder %s222, %s224
      %p231 = scmp.eq.s32.totalorder %s25, 1
      %p232 = por %p230, %p231
      %p233 = scmp.ne.s32.totalorder %s224, %s225
      %p234 = scmp.eq.s32.totalorder %s25, 0
      %p235 = por %p233, %p234
      %p236 = scmp.ne.s32.totalorder %s224, %s225
      %p237 = scmp.eq.s32.totalorder %s26, 1
      %p238 = por %p236, %p237
      %p240 = scmp.ne.s32.totalorder %s225, %s239
      %p241 = scmp.eq.s32.totalorder %s26, 0
      %p242 = por %p240, %p241
      %s244 = sadd.s32 %s243, 1
      %p247 = scmp.eq.s32.totalorder %s20, 1
      %p248 = scmp.ne.s32.totalorder %s243, %s245
      %p249 = scmp.eq.s32.totalorder %s20, 0
      %p250 = por %p248, %p249
      %p251 = scmp.ne.s32.totalorder %s243, %s245
      %p252 = scmp.eq.s32.totalorder %s25, 1
      %p253 = por %p251, %p252
      %p254 = scmp.ne.s32.totalorder %s245, %s246
      %p255 = scmp.eq.s32.totalorder %s25, 0
      %p256 = por %p254, %p255
      %p257 = scmp.ne.s32.totalorder %s245, %s246
      %p258 = scmp.eq.s32.totalorder %s26, 1
      %p259 = por %p257, %p258
      %p261 = scmp.ne.s32.totalorder %s246, %s260
      %p262 = scmp.eq.s32.totalorder %s26, 0
      %p263 = por %p261, %p262
      %s264 = ssub.s32 %s20, %s27
      %p265 = scmp.eq.s32.totalorder %s264, 0
      %s267 = sadd.s32 %s266, 1
      %s268 = scalar_select %p265, %s266, %s267
      %p271 = pneg %p265
      %p272 = scmp.eq.s32.totalorder %s20, 1
      %p273 = por %p271, %p272
      %p274 = scmp.ne.s32.totalorder %s266, %s269
      %p275 = scmp.eq.s32.totalorder %s20, 0
      %p276 = por %p274, %p275
      %p277 = scmp.ne.s32.totalorder %s266, %s269
      %p278 = scmp.eq.s32.totalorder %s25, 1
      %p279 = por %p277, %p278
      %p280 = scmp.ne.s32.totalorder %s269, %s270
      %p281 = scmp.eq.s32.totalorder %s25, 0
      %p282 = por %p280, %p281
      %p283 = scmp.ne.s32.totalorder %s269, %s270
      %p284 = scmp.eq.s32.totalorder %s26, 1
      %p285 = por %p283, %p284
      %p287 = scmp.ne.s32.totalorder %s270, %s286
      %p288 = scmp.eq.s32.totalorder %s26, 0
      %p289 = por %p287, %p288
      %p290 = scmp.le.s32.totalorder 1, %s20
      %p291 = scmp.lt.s32.totalorder %s20, 3
      %p292 = pnand %p290, %p291
      %p293 = pneg %p292
      // Predicated region
      $region9: #{forward.1} parent=5 // pred_check
        _
      $region10: #{forward.1} parent=5 // pred_check_branch
        %295 = sbr.rel (%p292) target = $region12
      $region11: #{forward.1} parent=5 // pred_region
        %s296 = ssub.s32 %s20, 1
        // Predicated region
        $region13: #{forward.1} parent=11 // pred_check
          %p297 = pneg %p67
        $region14: #{forward.1} parent=11 // pred_check_branch
          %299 = sbr.rel (%p297) target = $region16
        $region15: #{forward.1} parent=11 // pred_region
          _
        $region16: #{forward.1} parent=11 // pred_fallthru
          _
        // Predicated region
        $region17: #{forward.1} parent=11 // pred_check
          %p300 = pneg %p88
        $region18: #{forward.1} parent=11 // pred_check_branch
          %302 = sbr.rel (%p300) target = $region20
        $region19: #{forward.1} parent=11 // pred_region
          _
        $region20: #{forward.1} parent=11 // pred_fallthru
          _
        // Predicated region
        $region21: #{forward.1} parent=11 // pred_check
          %p303 = pneg %p109
        $region22: #{forward.1} parent=11 // pred_check_branch
          %305 = sbr.rel (%p303) target = $region24
        $region23: #{forward.1} parent=11 // pred_region
          _
        $region24: #{forward.1} parent=11 // pred_fallthru
          _
        // Predicated region
        $region25: #{forward.1} parent=11 // pred_check
          %p306 = pneg %p130
        $region26: #{forward.1} parent=11 // pred_check_branch
          %308 = sbr.rel (%p306) target = $region28
        $region27: #{forward.1} parent=11 // pred_region
          _
        $region28: #{forward.1} parent=11 // pred_fallthru
          _
        // Predicated region
        $region29: #{forward.1} parent=11 // pred_check
          %p309 = pneg %p151
        $region30: #{forward.1} parent=11 // pred_check_branch
          %311 = sbr.rel (%p309) target = $region32
        $region31: #{forward.1} parent=11 // pred_region
          _
        $region32: #{forward.1} parent=11 // pred_fallthru
          _
        // Predicated region
        $region33: #{forward.1} parent=11 // pred_check
          %p312 = pneg %p172
        $region34: #{forward.1} parent=11 // pred_check_branch
          %314 = sbr.rel (%p312) target = $region36
        $region35: #{forward.1} parent=11 // pred_region
          _
        $region36: #{forward.1} parent=11 // pred_fallthru
          _
        // Predicated region
        $region37: #{forward.1} parent=11 // pred_check
          %p315 = pneg %p193
        $region38: #{forward.1} parent=11 // pred_check_branch
          %317 = sbr.rel (%p315) target = $region40
        $region39: #{forward.1} parent=11 // pred_region
          _
        $region40: #{forward.1} parent=11 // pred_fallthru
          _
        // Predicated region
        $region41: #{forward.1} parent=11 // pred_check
          %p318 = pneg %p214
        $region42: #{forward.1} parent=11 // pred_check_branch
          %320 = sbr.rel (%p318) target = $region44
        $region43: #{forward.1} parent=11 // pred_region
          _
        $region44: #{forward.1} parent=11 // pred_fallthru
          _
        // Predicated region
        $region45: #{forward.1} parent=11 // pred_check
          %p321 = pneg %p235
        $region46: #{forward.1} parent=11 // pred_check_branch
          %323 = sbr.rel (%p321) target = $region48
        $region47: #{forward.1} parent=11 // pred_region
          _
        $region48: #{forward.1} parent=11 // pred_fallthru
          _
        // Predicated region
        $region49: #{forward.1} parent=11 // pred_check
          %p324 = pneg %p256
        $region50: #{forward.1} parent=11 // pred_check_branch
          %326 = sbr.rel (%p324) target = $region52
        $region51: #{forward.1} parent=11 // pred_region
          _
        $region52: #{forward.1} parent=11 // pred_fallthru
          _
      $region12: #{forward.1} parent=5 // pred_fallthru
        _
      %p327 = scmp.lt.s32.totalorder %s20, 2
      // Predicated region
      $region53: #{forward.1} parent=5 // pred_check
        %p328 = pneg %p327
      $region54: #{forward.1} parent=5 // pred_check_branch
        %330 = sbr.rel (%p328) target = $region56
      $region55: #{forward.1} parent=5 // pred_region
        // Predicated region
        $region57: #{forward.1} parent=55 // pred_check
          %p331 = pneg %p40
        $region58: #{forward.1} parent=55 // pred_check_branch
          %333 = sbr.rel (%p331) target = $region60
        $region59: #{forward.1} parent=55 // pred_region
          %p334 = scmp.lt.s32.totalorder %s20, 1
          %s335 = scalar_select %p334, %s20, 1
          %s336 = smul.addr %s335, 4
          %s337 = smul.addr %s336, 8
          %s338 = scalar_lea.vmem %s0, %s337
        $region60: #{forward.1} parent=55 // pred_fallthru
          _
      $region56: #{forward.1} parent=5 // pred_fallthru
        _
      %p339 = scmp.le.s32.totalorder 1, %s20
      %p340 = scmp.lt.s32.totalorder %s20, 3
      %p341 = pnand %p339, %p340
      %p342 = pneg %p341
      // Predicated region
      $region61: #{forward.1} parent=5 // pred_check
        _
      $region62: #{forward.1} parent=5 // pred_check_branch
        %344 = sbr.rel (%p341) target = $region64
      $region63: #{forward.1} parent=5 // pred_region
        %s345 = ssub.s32 %s20, 1
        %p346 = scmp.lt.s32.totalorder %s25, 1
        %s347 = scalar_select %p346, %s25, 1
        %s348 = smul.addr %s347, 4
        %s349 = smul.addr %s348, 8
        %s350 = scalar_lea.vmem %s0, %s349
        %p351 = pneg %p46
        %p352 = pneg %p43
        %p353 = pneg %p67
        %p354 = pneg %p64
        %p355 = pneg %p88
        %p356 = pneg %p85
        %p357 = pneg %p109
        %p358 = pneg %p106
        %p359 = pneg %p130
        %p360 = pneg %p127
        %p361 = pneg %p151
        %p362 = pneg %p148
        %p363 = pneg %p172
        %p364 = pneg %p169
        %p365 = pneg %p193
        %p366 = pneg %p190
        %p367 = pneg %p214
        %p368 = pneg %p211
        %p369 = pneg %p235
        %p370 = pneg %p232
        %p371 = pneg %p256
        %p372 = pneg %p253
        %p373 = pneg %p282
        %p374 = pneg %p279
        %s375 = sand.u32 %s269, 1
        %s376 = scalar_lea.sflag [#allocation3], %s375
        %s377 = sand.u32 %s269, 1
        %s378 = scalar_lea.vmem [#allocation2], %s377
        %p379 = scmp.lt.s32.totalorder %s25, 1
        %s380 = scalar_select %p379, %s25, 1
        %s381 = smul.addr %s380, 4
        %s382 = smul.addr %s381, 8
        %s383 = scalar_lea.vmem %s0, %s382
        %v384 = vld [vmem:[%s383] sm:$0xff]
        %v385 = vld [vmem:[%s383 + $0x8] sm:$0xff]
        %v386 = vld [vmem:[%s383 + $0x10] sm:$0xff]
        %v387 = vld [vmem:[%s383 + $0x18] sm:$0xff]
        %vm392 = vcmask 1046528
        %v393 = vrot.slane %v384, 1
        %v394 = vrot.slane %v385, 1
        %v395 = vsel %vm392, %v393, %v394
        %v396 = vrot.slane %v386, 1
        %v397 = vsel %vm392, %v394, %v396
        %v398 = vrot.slane %v387, 1
        %v399 = vsel %vm392, %v396, %v398
        %400 = vrot.lane.b32.xlu0 %v395, 96
        %v401 = vpop.permute.xlu0 %400
        %402 = vrot.lane.b32.xlu0 %v397, 96
        %v403 = vpop.permute.xlu0 %402
        %404 = vrot.lane.b32.xlu0 %v399, 96
        %v405 = vpop.permute.xlu0 %404
        %406 = vrot.lane.b32.xlu0 %v398, 96
        %v407 = vpop.permute.xlu0 %406
        %vm412 = vcmask 1045504
        %v413 = vrot.slane %v384, 2
        %v414 = vrot.slane %v385, 2
        %v415 = vsel %vm412, %v413, %v414
        %v416 = vrot.slane %v386, 2
        %v417 = vsel %vm412, %v414, %v416
        %v418 = vrot.slane %v387, 2
        %v419 = vsel %vm412, %v416, %v418
        %420 = vrot.lane.b32.xlu0 %v415, 64
        %v421 = vpop.permute.xlu0 %420
        %422 = vrot.lane.b32.xlu0 %v417, 64
        %v423 = vpop.permute.xlu0 %422
        %424 = vrot.lane.b32.xlu0 %v419, 64
        %v425 = vpop.permute.xlu0 %424
        %426 = vrot.lane.b32.xlu0 %v418, 64
        %v427 = vpop.permute.xlu0 %426
        %vm432 = vcmask 1044480
        %v433 = vrot.slane %v384, 3
        %v434 = vrot.slane %v385, 3
        %v435 = vsel %vm432, %v433, %v434
        %v436 = vrot.slane %v386, 3
        %v437 = vsel %vm432, %v434, %v436
        %v438 = vrot.slane %v387, 3
        %v439 = vsel %vm432, %v436, %v438
        %440 = vrot.lane.b32.xlu0 %v435, 32
        %v441 = vpop.permute.xlu0 %440
        %442 = vrot.lane.b32.xlu0 %v437, 32
        %v443 = vpop.permute.xlu0 %442
        %444 = vrot.lane.b32.xlu0 %v439, 32
        %v445 = vpop.permute.xlu0 %444
        %446 = vrot.lane.b32.xlu0 %v438, 32
        %v447 = vpop.permute.xlu0 %446
        %vm452 = vcmask 1043456
        %v453 = vrot.slane %v384, 4
        %v454 = vrot.slane %v385, 4
        %v455 = vsel %vm452, %v453, %v454
        %v456 = vrot.slane %v386, 4
        %v457 = vsel %vm452, %v454, %v456
        %v458 = vrot.slane %v387, 4
        %v459 = vsel %vm452, %v456, %v458
        %vm460 = vcmask 785408
        %v461 = vsel %vm460, %v384, %v401
        %v462 = vsel %vm460, %v385, %v403
        %v463 = vsel %vm460, %v386, %v405
        %v464 = vsel %vm460, %v387, %v407
        %vm465 = vcmask 523264
        %v466 = vsel %vm465, %v401, %v421
        %v467 = vsel %vm465, %v403, %v423
        %v468 = vsel %vm465, %v405, %v425
        %v469 = vsel %vm465, %v407, %v427
        %vm470 = vcmask 261120
        %v471 = vsel %vm470, %v421, %v441
        %v472 = vsel %vm470, %v423, %v443
        %v473 = vsel %vm470, %v425, %v445
        %v474 = vsel %vm470, %v427, %v447
        %v475 = vld [vmem:[%s1] sm:$0xff]
        %v476 = vld [vmem:[%s1 + $0x8] sm:$0xff]
        %v477 = vld [vmem:[%s1 + $0x10] sm:$0xff]
        %v478 = vld [vmem:[%s1 + $0x18] sm:$0xff]
        %v479 = vld [vmem:[%s1 + $0x20] sm:$0xff]
        %v480 = vld [vmem:[%s1 + $0x28] sm:$0xff]
        %v481 = vld [vmem:[%s1 + $0x30] sm:$0xff]
        %v482 = vld [vmem:[%s1 + $0x38] sm:$0xff]
        %v483 = vld [vmem:[%s1 + $0x40] sm:$0xff]
        %v484 = vld [vmem:[%s1 + $0x48] sm:$0xff]
        %v485 = vld [vmem:[%s1 + $0x50] sm:$0xff]
        %v486 = vld [vmem:[%s1 + $0x58] sm:$0xff]
        %v487 = vld [vmem:[%s1 + $0x60] sm:$0xff]
        %v488 = vld [vmem:[%s1 + $0x68] sm:$0xff]
        %v489 = vld [vmem:[%s1 + $0x70] sm:$0xff]
        %v490 = vld [vmem:[%s1 + $0x78] sm:$0xff]
        %v491 = vld [vmem:[%s1 + $0x80] sm:$0xff]
        %v492 = vld [vmem:[%s1 + $0x88] sm:$0xff]
        %v493 = vld [vmem:[%s1 + $0x90] sm:$0xff]
        %v494 = vld [vmem:[%s1 + $0x98] sm:$0xff]
        %v495 = vld [vmem:[%s1 + $0xa0] sm:$0xff]
        %v496 = vld [vmem:[%s1 + $0xa8] sm:$0xff]
        %v497 = vld [vmem:[%s1 + $0xb0] sm:$0xff]
        %v498 = vld [vmem:[%s1 + $0xb8] sm:$0xff]
        %v499 = vld [vmem:[%s1 + $0xc0] sm:$0xff]
        %v500 = vld [vmem:[%s1 + $0xc8] sm:$0xff]
        %v501 = vld [vmem:[%s1 + $0xd0] sm:$0xff]
        %v502 = vld [vmem:[%s1 + $0xd8] sm:$0xff]
        %v503 = vld [vmem:[%s1 + $0xe0] sm:$0xff]
        %v504 = vld [vmem:[%s1 + $0xe8] sm:$0xff]
        %v505 = vld [vmem:[%s1 + $0xf0] sm:$0xff]
        %v506 = vld [vmem:[%s1 + $0xf8] sm:$0xff]
        %v507 = vld [vmem:[%s1 + $0x100] sm:$0xff]
        %v508 = vld [vmem:[%s1 + $0x108] sm:$0xff]
        %v509 = vld [vmem:[%s1 + $0x110] sm:$0xff]
        %v510 = vld [vmem:[%s1 + $0x118] sm:$0xff]
        %v511 = vld [vmem:[%s1 + $0x120] sm:$0xff]
        %v512 = vld [vmem:[%s1 + $0x128] sm:$0xff]
        %v513 = vld [vmem:[%s1 + $0x130] sm:$0xff]
        %v514 = vld [vmem:[%s1 + $0x138] sm:$0xff]
        %v515 = vld [vmem:[%s1 + $0x140] sm:$0xff]
        %v516 = vld [vmem:[%s1 + $0x148] sm:$0xff]
        %v517 = vld [vmem:[%s1 + $0x150] sm:$0xff]
        %v518 = vld [vmem:[%s1 + $0x158] sm:$0xff]
        %v519 = vld [vmem:[%s1 + $0x160] sm:$0xff]
        %v520 = vld [vmem:[%s1 + $0x168] sm:$0xff]
        %v521 = vld [vmem:[%s1 + $0x170] sm:$0xff]
        %v522 = vld [vmem:[%s1 + $0x178] sm:$0xff]
        %v523 = vld [vmem:[%s1 + $0x180] sm:$0xff]
        %v524 = vld [vmem:[%s1 + $0x188] sm:$0xff]
        %v525 = vld [vmem:[%s1 + $0x190] sm:$0xff]
        %v526 = vld [vmem:[%s1 + $0x198] sm:$0xff]
        %v527 = vld [vmem:[%s1 + $0x1a0] sm:$0xff]
        %v528 = vld [vmem:[%s1 + $0x1a8] sm:$0xff]
        %v529 = vld [vmem:[%s1 + $0x1b0] sm:$0xff]
        %v530 = vld [vmem:[%s1 + $0x1b8] sm:$0xff]
        %v531 = vld [vmem:[%s1 + $0x1c0] sm:$0xff]
        %v532 = vld [vmem:[%s1 + $0x1c8] sm:$0xff]
        %v533 = vld [vmem:[%s1 + $0x1d0] sm:$0xff]
        %v534 = vld [vmem:[%s1 + $0x1d8] sm:$0xff]
        %v535 = vld [vmem:[%s1 + $0x1e0] sm:$0xff]
        %v536 = vld [vmem:[%s1 + $0x1e8] sm:$0xff]
        %v537 = vld [vmem:[%s1 + $0x1f0] sm:$0xff]
        %v538 = vld [vmem:[%s1 + $0x1f8] sm:$0xff]
        %v539 = vld [vmem:[%s1 + $0x200] sm:$0xff]
        %v540 = vld [vmem:[%s1 + $0x208] sm:$0xff]
        %v541 = vld [vmem:[%s1 + $0x210] sm:$0xff]
        %v542 = vld [vmem:[%s1 + $0x218] sm:$0xff]
        %v543 = vld [vmem:[%s1 + $0x220] sm:$0xff]
        %v544 = vld [vmem:[%s1 + $0x228] sm:$0xff]
        %v545 = vld [vmem:[%s1 + $0x230] sm:$0xff]
        %v546 = vld [vmem:[%s1 + $0x238] sm:$0xff]
        %v547 = vld [vmem:[%s1 + $0x240] sm:$0xff]
        %v548 = vld [vmem:[%s1 + $0x248] sm:$0xff]
        %v549 = vld [vmem:[%s1 + $0x250] sm:$0xff]
        %v550 = vld [vmem:[%s1 + $0x258] sm:$0xff]
        %v551 = vld [vmem:[%s1 + $0x260] sm:$0xff]
        %v552 = vld [vmem:[%s1 + $0x268] sm:$0xff]
        %v553 = vld [vmem:[%s1 + $0x270] sm:$0xff]
        %v554 = vld [vmem:[%s1 + $0x278] sm:$0xff]
        %v555 = vld [vmem:[%s1 + $0x280] sm:$0xff]
        %v556 = vld [vmem:[%s1 + $0x288] sm:$0xff]
        %v557 = vld [vmem:[%s1 + $0x290] sm:$0xff]
        %v558 = vld [vmem:[%s1 + $0x298] sm:$0xff]
        %v559 = vld [vmem:[%s1 + $0x2a0] sm:$0xff]
        %v560 = vld [vmem:[%s1 + $0x2a8] sm:$0xff]
        %v561 = vld [vmem:[%s1 + $0x2b0] sm:$0xff]
        %v562 = vld [vmem:[%s1 + $0x2b8] sm:$0xff]
        %v563 = vld [vmem:[%s1 + $0x2c0] sm:$0xff]
        %v564 = vld [vmem:[%s1 + $0x2c8] sm:$0xff]
        %v565 = vld [vmem:[%s1 + $0x2d0] sm:$0xff]
        %v566 = vld [vmem:[%s1 + $0x2d8] sm:$0xff]
        %v567 = vld [vmem:[%s1 + $0x2e0] sm:$0xff]
        %v568 = vld [vmem:[%s1 + $0x2e8] sm:$0xff]
        %v569 = vld [vmem:[%s1 + $0x2f0] sm:$0xff]
        %v570 = vld [vmem:[%s1 + $0x2f8] sm:$0xff]
        %v571 = vld [vmem:[%s1 + $0x300] sm:$0xff]
        %v572 = vld [vmem:[%s1 + $0x308] sm:$0xff]
        %v573 = vld [vmem:[%s1 + $0x310] sm:$0xff]
        %v574 = vld [vmem:[%s1 + $0x318] sm:$0xff]
        %v575 = vld [vmem:[%s1 + $0x320] sm:$0xff]
        %v576 = vld [vmem:[%s1 + $0x328] sm:$0xff]
        %v577 = vld [vmem:[%s1 + $0x330] sm:$0xff]
        %v578 = vld [vmem:[%s1 + $0x338] sm:$0xff]
        %v579 = vld [vmem:[%s1 + $0x340] sm:$0xff]
        %v580 = vld [vmem:[%s1 + $0x348] sm:$0xff]
        %v581 = vld [vmem:[%s1 + $0x350] sm:$0xff]
        %v582 = vld [vmem:[%s1 + $0x358] sm:$0xff]
        %v583 = vld [vmem:[%s1 + $0x360] sm:$0xff]
        %v584 = vld [vmem:[%s1 + $0x368] sm:$0xff]
        %v585 = vld [vmem:[%s1 + $0x370] sm:$0xff]
        %v586 = vld [vmem:[%s1 + $0x378] sm:$0xff]
        %v587 = vld [vmem:[%s1 + $0x380] sm:$0xff]
        %v588 = vld [vmem:[%s1 + $0x388] sm:$0xff]
        %v589 = vld [vmem:[%s1 + $0x390] sm:$0xff]
        %v590 = vld [vmem:[%s1 + $0x398] sm:$0xff]
        %v591 = vld [vmem:[%s1 + $0x3a0] sm:$0xff]
        %v592 = vld [vmem:[%s1 + $0x3a8] sm:$0xff]
        %v593 = vld [vmem:[%s1 + $0x3b0] sm:$0xff]
        %v594 = vld [vmem:[%s1 + $0x3b8] sm:$0xff]
        %v595 = vld [vmem:[%s2] sm:$0x3]
        %v597 = vlaneseq
        %v598 = vshrl.u32 %v597, 7
        %v599 = vsub.s32 0, %v598
        %v600 = vrot.slane %v595, %v599
        %v601 = vlaneseq
        %v602 = vshrl.u32 %v601, 7
        %v603 = vsub.s32 1, %v602
        %v604 = vrot.slane %v595, %v603
        %v607 = vsel %vm460, %v455, 0
        %v609 = vsel %vm460, %v457, 0
        %v611 = vsel %vm460, %v459, 0
        %v613 = vsel %vm460, %v458, 0
        %615 = vmatprep.subr.mxu0 %v476
        %616 = vmatpush1.msra.mxu0 %v475
        %617 = vmatprep.subr.mxu0 %v478
        %618 = vmatpush1.msra.mxu0 %v477
        %619 = vmatprep.subr.mxu0 %v480
        %620 = vmatpush1.msra.mxu0 %v479
        %621 = vmatprep.subr.mxu0 %v482
        %622 = vmatpush1.msra.mxu0 %v481
        %623 = vmatprep.subr.mxu0 %v484
        %624 = vmatpush1.msra.mxu0 %v483
        %625 = vmatprep.subr.mxu0 %v486
        %626 = vmatpush1.msra.mxu0 %v485
        %627 = vmatprep.subr.mxu0 %v488
        %628 = vmatpush1.msra.mxu0 %v487
        %629 = vmatprep.subr.mxu0 %v490
        %630 = vmatpush1.msra.mxu0 %v489
        %631 = vmatprep.subr.mxu0 %v492
        %632 = vmatpush1.msra.mxu0 %v491
        %633 = vmatprep.subr.mxu0 %v494
        %634 = vmatpush1.msra.mxu0 %v493
        %635 = vmatprep.subr.mxu0 %v496
        %636 = vmatpush1.msra.mxu0 %v495
        %637 = vmatprep.subr.mxu0 %v498
        %638 = vmatpush1.msra.mxu0 %v497
        %639 = vmatprep.subr.mxu0 %v500
        %640 = vmatpush1.msra.mxu0 %v499
        %641 = vmatprep.subr.mxu0 %v502
        %642 = vmatpush1.msra.mxu0 %v501
        %643 = vmatprep.subr.mxu0 %v504
        %644 = vmatpush1.msra.mxu0 %v503
        %645 = vmatprep.subr.mxu0 %v506
        %646 = vmatpush1.msra.mxu0 %v505
        %647 = vmatprep.subr.mxu0 %v508
        %648 = vmatpush1.msra.mxu0 %v507
        %649 = vmatprep.subr.mxu0 %v510
        %650 = vmatpush1.msra.mxu0 %v509
        %651 = vmatprep.subr.mxu0 %v512
        %652 = vmatpush1.msra.mxu0 %v511
        %653 = vmatprep.subr.mxu0 %v514
        %654 = vmatpush1.msra.mxu0 %v513
        %655 = vmatprep.subr.mxu0 %v516
        %656 = vmatpush1.msra.mxu0 %v515
        %657 = vmatprep.subr.mxu0 %v518
        %658 = vmatpush1.msra.mxu0 %v517
        %659 = vmatprep.subr.mxu0 %v520
        %660 = vmatpush1.msra.mxu0 %v519
        %661 = vmatprep.subr.mxu0 %v522
        %662 = vmatpush1.msra.mxu0 %v521
        %663 = vmatprep.subr.mxu0 %v524
        %664 = vmatpush1.msra.mxu0 %v523
        %665 = vmatprep.subr.mxu0 %v526
        %666 = vmatpush1.msra.mxu0 %v525
        %667 = vmatprep.subr.mxu0 %v528
        %668 = vmatpush1.msra.mxu0 %v527
        %669 = vmatprep.subr.mxu0 %v530
        %670 = vmatpush1.msra.mxu0 %v529
        %671 = vmatprep.subr.mxu0 %v532
        %672 = vmatpush1.msra.mxu0 %v531
        %673 = vmatprep.subr.mxu0 %v534
        %674 = vmatpush1.msra.mxu0 %v533
        %675 = vmatprep.subr.mxu0 %v536
        %676 = vmatpush1.msra.mxu0 %v535
        %677 = vmatprep.subr.mxu0 %v538
        %678 = vmatpush1.msra.mxu0 %v537
        %679 = vmatprep.mubr.f32.mxu0 %v466
        %680 = vmatmul.mubr.f32.gmra.mrb[0].mxu0 %v461
        %v681 = vpop.f32.mrb[0].mxu0
        %v682 = vadd.f32 %v600, %v681
        %v683 = vpop.f32.mrb[0].mxu0
        %v684 = vadd.f32 %v604, %v683
        %685 = vmatprep.mubr.f32.mxu0 %v467
        %686 = vmatmul.mubr.f32.gmra.mrb[0].mxu0 %v462
        %v687 = vpop.f32.mrb[0].mxu0
        %v688 = vadd.f32 %v600, %v687
        %v689 = vpop.f32.mrb[0].mxu0
        %v690 = vadd.f32 %v604, %v689
        %691 = vmatprep.mubr.f32.mxu0 %v468
        %692 = vmatmul.mubr.f32.gmra.mrb[0].mxu0 %v463
        %v693 = vpop.f32.mrb[0].mxu0
        %v694 = vadd.f32 %v600, %v693
        %v695 = vpop.f32.mrb[0].mxu0
        %v696 = vadd.f32 %v604, %v695
        %697 = vmatprep.mubr.f32.mxu0 %v469
        %698 = vmatmul.mubr.f32.gmra.mrb[0].mxu0 %v464
        %v699 = vpop.f32.mrb[0].mxu0
        %v700 = vadd.f32 %v600, %v699
        %v701 = vpop.f32.mrb[0].mxu0
        %v702 = vadd.f32 %v604, %v701
        %703 = vdwg.mxu0
        %704 = vmatprep.subr.mxu0 %v540
        %705 = vmatpush1.msra.mxu0 %v539
        %706 = vmatprep.subr.mxu0 %v542
        %707 = vmatpush1.msra.mxu0 %v541
        %708 = vmatprep.subr.mxu0 %v544
        %709 = vmatpush1.msra.mxu0 %v543
        %710 = vmatprep.subr.mxu0 %v546
        %711 = vmatpush1.msra.mxu0 %v545
        %712 = vmatprep.subr.mxu0 %v548
        %713 = vmatpush1.msra.mxu0 %v547
        %714 = vmatprep.subr.mxu0 %v550
        %715 = vmatpush1.msra.mxu0 %v549
        %716 = vmatprep.subr.mxu0 %v552
        %717 = vmatpush1.msra.mxu0 %v551
        %718 = vmatprep.subr.mxu0 %v554
        %719 = vmatpush1.msra.mxu0 %v553
        %720 = vmatprep.subr.mxu0 %v556
        %721 = vmatpush1.msra.mxu0 %v555
        %722 = vmatprep.subr.mxu0 %v558
        %723 = vmatpush1.msra.mxu0 %v557
        %724 = vmatprep.subr.mxu0 %v560
        %725 = vmatpush1.msra.mxu0 %v559
        %726 = vmatprep.subr.mxu0 %v562
        %727 = vmatpush1.msra.mxu0 %v561
        %728 = vmatprep.subr.mxu0 %v564
        %729 = vmatpush1.msra.mxu0 %v563
        %730 = vmatprep.subr.mxu0 %v566
        %731 = vmatpush1.msra.mxu0 %v565
        %732 = vmatprep.subr.mxu0 %v568
        %733 = vmatpush1.msra.mxu0 %v567
        %734 = vmatprep.subr.mxu0 %v570
        %735 = vmatpush1.msra.mxu0 %v569
        %736 = vmatprep.subr.mxu0 %v572
        %737 = vmatpush1.msra.mxu0 %v571
        %738 = vmatprep.subr.mxu0 %v574
        %739 = vmatpush1.msra.mxu0 %v573
        %740 = vmatprep.subr.mxu0 %v576
        %741 = vmatpush1.msra.mxu0 %v575
        %742 = vmatprep.subr.mxu0 %v578
        %743 = vmatpush1.msra.mxu0 %v577
        %744 = vmatprep.subr.mxu0 %v580
        %745 = vmatpush1.msra.mxu0 %v579
        %746 = vmatprep.subr.mxu0 %v582
        %747 = vmatpush1.msra.mxu0 %v581
        %748 = vmatprep.subr.mxu0 %v584
        %749 = vmatpush1.msra.mxu0 %v583
        %750 = vmatprep.subr.mxu0 %v586
        %751 = vmatpush1.msra.mxu0 %v585
        %752 = vmatprep.subr.mxu0 %v588
        %753 = vmatpush1.msra.mxu0 %v587
        %754 = vmatprep.subr.mxu0 %v590
        %755 = vmatpush1.msra.mxu0 %v589
        %756 = vmatprep.subr.mxu0 %v592
        %757 = vmatpush1.msra.mxu0 %v591
        %758 = vmatprep.subr.mxu0 %v594
        %759 = vmatpush1.msra.mxu0 %v593
        %760 = vmatprep.subr.mxu0 0.0
        %761 = vmatpush1.msra.mxu0 0.0
        %762 = vmatprep.subr.mxu0 0.0
        %763 = vmatpush1.msra.mxu0 0.0
        %764 = vmatprep.subr.mxu0 0.0
        %765 = vmatpush1.msra.mxu0 0.0
        %766 = vmatprep.subr.mxu0 0.0
        %767 = vmatpush1.msra.mxu0 0.0
        %768 = vmatprep.mubr.f32.mxu0 %v607
        %769 = vmatmul.mubr.f32.gmra.mrb[0].mxu0 %v471
        %v770 = vpop.f32.mrb[0].mxu0
        %v771 = vadd.f32 %v682, %v770
        %v772 = vpop.f32.mrb[0].mxu0
        %v773 = vadd.f32 %v684, %v772
        %774 = vmatprep.mubr.f32.mxu0 %v609
        %775 = vmatmul.mubr.f32.gmra.mrb[0].mxu0 %v472
        %v776 = vpop.f32.mrb[0].mxu0
        %v777 = vadd.f32 %v688, %v776
        %v778 = vpop.f32.mrb[0].mxu0
        %v779 = vadd.f32 %v690, %v778
        %780 = vmatprep.mubr.f32.mxu0 %v611
        %781 = vmatmul.mubr.f32.gmra.mrb[0].mxu0 %v473
        %v782 = vpop.f32.mrb[0].mxu0
        %v783 = vadd.f32 %v694, %v782
        %v784 = vpop.f32.mrb[0].mxu0
        %v785 = vadd.f32 %v696, %v784
        %786 = vmatprep.mubr.f32.mxu0 %v613
        %787 = vmatmul.mubr.f32.gmra.mrb[0].mxu0 %v474
        %v788 = vpop.f32.mrb[0].mxu0
        %v789 = vadd.f32 %v700, %v788
        %v790 = vpop.f32.mrb[0].mxu0
        %v791 = vadd.f32 %v702, %v790
        %792 = vdwg.mxu0
        %v793 = vmax.f32 %v771, 0.0
        %v794 = vmax.f32 %v773, 0.0
        %v795 = vmax.f32 %v777, 0.0
        %v796 = vmax.f32 %v779, 0.0
        %v797 = vmax.f32 %v783, 0.0
        %v798 = vmax.f32 %v785, 0.0
        %v799 = vmax.f32 %v789, 0.0
        %v800 = vmax.f32 %v791, 0.0
        %v803 = vrot.slane %v793, 1
        %v804 = vrot.slane %v794, 1
        %v807 = vrot.slane %v793, 2
        %v808 = vrot.slane %v794, 2
        %v811 = vrot.slane %v793, 3
        %v812 = vrot.slane %v794, 3
        %v817 = vrot.slane %v795, 4
        %v818 = vrot.slane %v796, 4
        %v821 = vrot.slane %v795, 5
        %v822 = vrot.slane %v796, 5
        %v825 = vrot.slane %v795, 6
        %v826 = vrot.slane %v796, 6
        %v829 = vrot.slane %v795, 7
        %v830 = vrot.slane %v796, 7
        %v835 = vrot.slane %v797, 1
        %v836 = vrot.slane %v798, 1
        %v839 = vrot.slane %v797, 2
        %v840 = vrot.slane %v798, 2
        %v843 = vrot.slane %v797, 3
        %v844 = vrot.slane %v798, 3
        %v849 = vrot.slane %v799, 4
        %v850 = vrot.slane %v800, 4
        %v853 = vrot.slane %v799, 5
        %v854 = vrot.slane %v800, 5
        %vm857 = vcmask 1040384
        %v858 = vsel %vm857, %v793, %v803
        %v859 = vsel %vm857, %v794, %v804
        %vm860 = vcmask 1041408
        %v861 = vsel %vm860, %v858, %v807
        %v862 = vsel %vm860, %v859, %v808
        %vm863 = vcmask 1042432
        %v864 = vsel %vm863, %v861, %v811
        %v865 = vsel %vm863, %v862, %v812
        %v866 = vsel %vm452, %v864, %v817
        %v867 = vsel %vm452, %v865, %v818
        %v868 = vsel %vm432, %v866, %v821
        %v869 = vsel %vm432, %v867, %v822
        %v870 = vsel %vm412, %v868, %v825
        %v871 = vsel %vm412, %v869, %v826
        %v872 = vsel %vm392, %v870, %v829
        %v873 = vsel %vm392, %v871, %v830
        %v874 = vsel %vm857, %v797, %v835
        %v875 = vsel %vm857, %v798, %v836
        %v876 = vsel %vm860, %v874, %v839
        %v877 = vsel %vm860, %v875, %v840
        %v878 = vsel %vm863, %v876, %v843
        %v879 = vsel %vm863, %v877, %v844
        %v880 = vsel %vm452, %v878, %v849
        %v881 = vsel %vm452, %v879, %v850
        %v882 = vsel %vm432, %v880, %v853
        %v883 = vsel %vm432, %v881, %v854
        %v884 = vrot.slane %v793, 4
        %v885 = vrot.slane %v794, 4
        %v888 = vrot.slane %v797, 4
        %v889 = vrot.slane %v798, 4
        %v892 = vrot.slane %v799, 6
        %v893 = vrot.slane %v800, 6
        %v896 = vsel %vm857, %v803, %v807
        %v897 = vsel %vm857, %v804, %v808
        %v898 = vsel %vm860, %v896, %v811
        %v899 = vsel %vm860, %v897, %v812
        %v900 = vsel %vm863, %v898, %v884
        %v901 = vsel %vm863, %v899, %v885
        %v902 = vsel %vm452, %v900, %v821
        %v903 = vsel %vm452, %v901, %v822
        %v904 = vsel %vm432, %v902, %v825
        %v905 = vsel %vm432, %v903, %v826
        %v906 = vsel %vm412, %v904, %v829
        %v907 = vsel %vm412, %v905, %v830
        %v908 = vsel %vm392, %v906, %v795
        %v909 = vsel %vm392, %v907, %v796
        %v910 = vsel %vm857, %v835, %v839
        %v911 = vsel %vm857, %v836, %v840
        %v912 = vsel %vm860, %v910, %v843
        %v913 = vsel %vm860, %v911, %v844
        %v914 = vsel %vm863, %v912, %v888
        %v915 = vsel %vm863, %v913, %v889
        %v916 = vsel %vm452, %v914, %v853
        %v917 = vsel %vm452, %v915, %v854
        %v918 = vsel %vm432, %v916, %v892
        %v919 = vsel %vm432, %v917, %v893
        %v920 = vmax.f32 %v872, %v908
        %v921 = vmax.f32 %v873, %v909
        %v922 = vmax.f32 %v882, %v918
        %v923 = vmax.f32 %v883, %v919
        %926 = vrot.lane.b32.xlu0 %v920, 122
        %v927 = vpop.permute.xlu0 %926
        %928 = vrot.lane.b32.xlu0 %v922, 122
        %v929 = vpop.permute.xlu0 %928
        %932 = vrot.lane.b32.xlu0 %v920, 116
        %v933 = vpop.permute.xlu0 %932
        %934 = vrot.lane.b32.xlu0 %v922, 116
        %v935 = vpop.permute.xlu0 %934
        %938 = vrot.lane.b32.xlu0 %v920, 110
        %v939 = vpop.permute.xlu0 %938
        %940 = vrot.lane.b32.xlu0 %v922, 110
        %v941 = vpop.permute.xlu0 %940
        %944 = vrot.lane.b32.xlu0 %v920, 104
        %v945 = vpop.permute.xlu0 %944
        %946 = vrot.lane.b32.xlu0 %v922, 104
        %v947 = vpop.permute.xlu0 %946
        %950 = vrot.lane.b32.xlu0 %v920, 98
        %v951 = vpop.permute.xlu0 %950
        %952 = vrot.lane.b32.xlu0 %v922, 98
        %v953 = vpop.permute.xlu0 %952
        %956 = vrot.lane.b32.xlu0 %v920, 92
        %v957 = vpop.permute.xlu0 %956
        %958 = vrot.lane.b32.xlu0 %v922, 92
        %v959 = vpop.permute.xlu0 %958
        %962 = vrot.lane.b32.xlu0 %v920, 86
        %v963 = vpop.permute.xlu0 %962
        %964 = vrot.lane.b32.xlu0 %v922, 86
        %v965 = vpop.permute.xlu0 %964
        %968 = vrot.lane.b32.xlu0 %v920, 80
        %v969 = vpop.permute.xlu0 %968
        %970 = vrot.lane.b32.xlu0 %v922, 80
        %v971 = vpop.permute.xlu0 %970
        %974 = vrot.lane.b32.xlu0 %v920, 74
        %v975 = vpop.permute.xlu0 %974
        %976 = vrot.lane.b32.xlu0 %v922, 74
        %v977 = vpop.permute.xlu0 %976
        %980 = vrot.lane.b32.xlu0 %v920, 68
        %v981 = vpop.permute.xlu0 %980
        %982 = vrot.lane.b32.xlu0 %v922, 68
        %v983 = vpop.permute.xlu0 %982
        %988 = vrot.lane.b32.xlu0 %v921, 62
        %v989 = vpop.permute.xlu0 %988
        %990 = vrot.lane.b32.xlu0 %v923, 62
        %v991 = vpop.permute.xlu0 %990
        %994 = vrot.lane.b32.xlu0 %v921, 56
        %v995 = vpop.permute.xlu0 %994
        %996 = vrot.lane.b32.xlu0 %v923, 56
        %v997 = vpop.permute.xlu0 %996
        %1000 = vrot.lane.b32.xlu0 %v921, 50
        %v1001 = vpop.permute.xlu0 %1000
        %1002 = vrot.lane.b32.xlu0 %v923, 50
        %v1003 = vpop.permute.xlu0 %1002
        %vm1006 = vcmask 48128
        %v1007 = vsel %vm1006, %v920, %v927
        %v1008 = vsel %vm1006, %v922, %v929
        %vm1009 = vcmask 97280
        %v1010 = vsel %vm1009, %v1007, %v933
        %v1011 = vsel %vm1009, %v1008, %v935
        %vm1012 = vcmask 146432
        %v1013 = vsel %vm1012, %v1010, %v939
        %v1014 = vsel %vm1012, %v1011, %v941
        %vm1015 = vcmask 195584
        %v1016 = vsel %vm1015, %v1013, %v945
        %v1017 = vsel %vm1015, %v1014, %v947
        %vm1018 = vcmask 244736
        %v1019 = vsel %vm1018, %v1016, %v951
        %v1020 = vsel %vm1018, %v1017, %v953
        %vm1021 = vcmask 293888
        %v1022 = vsel %vm1021, %v1019, %v957
        %v1023 = vsel %vm1021, %v1020, %v959
        %vm1024 = vcmask 343040
        %v1025 = vsel %vm1024, %v1022, %v963
        %v1026 = vsel %vm1024, %v1023, %v965
        %vm1027 = vcmask 392192
        %v1028 = vsel %vm1027, %v1025, %v969
        %v1029 = vsel %vm1027, %v1026, %v971
        %vm1030 = vcmask 441344
        %v1031 = vsel %vm1030, %v1028, %v975
        %v1032 = vsel %vm1030, %v1029, %v977
        %vm1033 = vcmask 490496
        %v1034 = vsel %vm1033, %v1031, %v981
        %v1035 = vsel %vm1033, %v1032, %v983
        %vm1036 = vcmask 539648
        %v1037 = vsel %vm1036, %v1034, %v989
        %v1038 = vsel %vm1036, %v1035, %v991
        %vm1039 = vcmask 588800
        %v1040 = vsel %vm1039, %v1037, %v995
        %v1041 = vsel %vm1039, %v1038, %v997
        %vm1042 = vcmask 637952
        %v1043 = vsel %vm1042, %v1040, %v1001
        %v1044 = vsel %vm1042, %v1041, %v1003
        %1045 = vrot.lane.b32.xlu0 %v920, 62
        %v1046 = vpop.permute.xlu0 %1045
        %1047 = vrot.lane.b32.xlu0 %v922, 62
        %v1048 = vpop.permute.xlu0 %1047
        %vm1049 = vcmask 506880
        %v1050 = vsel %vm1049, %v1046, %v989
        %v1051 = vsel %vm1049, %v1048, %v991
        %1054 = vrot.lane.b32.xlu0 %v921, 44
        %v1055 = vpop.permute.xlu0 %1054
        %1056 = vrot.lane.b32.xlu0 %v923, 44
        %v1057 = vpop.permute.xlu0 %1056
        %v1060 = vsel %vm1006, %v927, %v933
        %v1061 = vsel %vm1006, %v929, %v935
        %v1062 = vsel %vm1009, %v1060, %v939
        %v1063 = vsel %vm1009, %v1061, %v941
        %v1064 = vsel %vm1012, %v1062, %v945
        %v1065 = vsel %vm1012, %v1063, %v947
        %v1066 = vsel %vm1015, %v1064, %v951
        %v1067 = vsel %vm1015, %v1065, %v953
        %v1068 = vsel %vm1018, %v1066, %v957
        %v1069 = vsel %vm1018, %v1067, %v959
        %v1070 = vsel %vm1021, %v1068, %v963
        %v1071 = vsel %vm1021, %v1069, %v965
        %v1072 = vsel %vm1024, %v1070, %v969
        %v1073 = vsel %vm1024, %v1071, %v971
        %v1074 = vsel %vm1027, %v1072, %v975
        %v1075 = vsel %vm1027, %v1073, %v977
        %v1076 = vsel %vm1030, %v1074, %v981
        %v1077 = vsel %vm1030, %v1075, %v983
        %v1078 = vsel %vm1033, %v1076, %v1050
        %v1079 = vsel %vm1033, %v1077, %v1051
        %v1080 = vsel %vm1036, %v1078, %v995
        %v1081 = vsel %vm1036, %v1079, %v997
        %v1082 = vsel %vm1039, %v1080, %v1001
        %v1083 = vsel %vm1039, %v1081, %v1003
        %v1084 = vsel %vm1042, %v1082, %v1055
        %v1085 = vsel %vm1042, %v1083, %v1057
        %v1086 = vmax.f32 %v1043, %v1084
        %v1087 = vmax.f32 %v1044, %v1085
        %v1090 = vrot.slane %v1086, 1
        %v1091 = vrot.slane %v1087, 1
        %v1092 = vsel %vm392, %v1090, %v1091
        %1093 = vrot.lane.b32.xlu0 %v1092, 84
        %v1094 = vpop.permute.xlu0 %1093
        %1095 = vrot.lane.b32.xlu0 %v1091, 84
        %v1096 = vpop.permute.xlu0 %1095
        %v1099 = vrot.slane %v1086, 2
        %v1100 = vrot.slane %v1087, 2
        %v1101 = vsel %vm412, %v1099, %v1100
        %1102 = vrot.lane.b32.xlu0 %v1101, 40
        %v1103 = vpop.permute.xlu0 %1102
        %1104 = vrot.lane.b32.xlu0 %v1100, 40
        %v1105 = vpop.permute.xlu0 %1104
        %v1108 = vrot.slane %v1086, 3
        %v1109 = vrot.slane %v1087, 3
        %v1110 = vsel %vm432, %v1108, %v1109
        %1111 = vrot.lane.b32.xlu0 %v1110, 124
        %v1112 = vpop.permute.xlu0 %1111
        %1113 = vrot.lane.b32.xlu0 %v1109, 124
        %v1114 = vpop.permute.xlu0 %1113
        %v1117 = vrot.slane %v1086, 4
        %v1118 = vrot.slane %v1087, 4
        %v1119 = vsel %vm452, %v1117, %v1118
        %1120 = vrot.lane.b32.xlu0 %v1119, 80
        %v1121 = vpop.permute.xlu0 %1120
        %1122 = vrot.lane.b32.xlu0 %v1118, 80
        %v1123 = vpop.permute.xlu0 %1122
        %vm1126 = vcmask 687104
        %v1127 = vsel %vm1126, %v1086, %v1094
        %v1128 = vsel %vm1126, %v1087, %v1096
        %vm1129 = vcmask 326656
        %v1130 = vsel %vm1129, %v1094, %v1103
        %v1131 = vsel %vm1129, %v1096, %v1105
        %vm1132 = vcmask 1014784
        %v1133 = vsel %vm1132, %v1130, %v1112
        %v1134 = vsel %vm1132, %v1131, %v1114
        %vm1135 = vcmask 654336
        %v1136 = vsel %vm1135, %v1112, %v1121
        %v1137 = vsel %vm1135, %v1114, %v1123
        %v1138 = vld [vmem:[%s3] sm:$0xff]
        %v1139 = vld [vmem:[%s3 + $0x8] sm:$0xff]
        %v1140 = vld [vmem:[%s3 + $0x10] sm:$0xff]
        %v1141 = vld [vmem:[%s3 + $0x18] sm:$0xff]
        %v1142 = vld [vmem:[%s3 + $0x20] sm:$0xff]
        %v1143 = vld [vmem:[%s3 + $0x28] sm:$0xff]
        %v1144 = vld [vmem:[%s3 + $0x30] sm:$0xff]
        %v1145 = vld [vmem:[%s3 + $0x38] sm:$0xff]
        %v1146 = vld [vmem:[%s3 + $0x40] sm:$0xff]
        %v1147 = vld [vmem:[%s3 + $0x48] sm:$0xff]
        %v1148 = vld [vmem:[%s3 + $0x50] sm:$0xff]
        %v1149 = vld [vmem:[%s3 + $0x58] sm:$0xff]
        %v1150 = vld [vmem:[%s3 + $0x60] sm:$0xff]
        %v1151 = vld [vmem:[%s3 + $0x68] sm:$0xff]
        %v1152 = vld [vmem:[%s3 + $0x70] sm:$0xff]
        %v1153 = vld [vmem:[%s3 + $0x78] sm:$0xff]
        %v1154 = vld [vmem:[%s3 + $0x80] sm:$0xff]
        %v1155 = vld [vmem:[%s3 + $0x88] sm:$0xff]
        %v1156 = vld [vmem:[%s3 + $0x90] sm:$0xff]
        %v1157 = vld [vmem:[%s3 + $0x98] sm:$0xff]
        %v1158 = vld [vmem:[%s3 + $0xa0] sm:$0xff]
        %v1159 = vld [vmem:[%s3 + $0xa8] sm:$0xff]
        %v1160 = vld [vmem:[%s3 + $0xb0] sm:$0xff]
        %v1161 = vld [vmem:[%s3 + $0xb8] sm:$0xff]
        %v1162 = vld [vmem:[%s3 + $0xc0] sm:$0xff]
        %v1163 = vld [vmem:[%s3 + $0xc8] sm:$0xff]
        %v1164 = vld [vmem:[%s3 + $0xd0] sm:$0xff]
        %v1165 = vld [vmem:[%s3 + $0xd8] sm:$0xff]
        %v1166 = vld [vmem:[%s3 + $0xe0] sm:$0xff]
        %v1167 = vld [vmem:[%s3 + $0xe8] sm:$0xff]
        %v1168 = vld [vmem:[%s3 + $0xf0] sm:$0xff]
        %v1169 = vld [vmem:[%s3 + $0xf8] sm:$0xff]
        %v1170 = vld [vmem:[%s3 + $0x100] sm:$0xff]
        %v1171 = vld [vmem:[%s3 + $0x108] sm:$0xff]
        %v1172 = vld [vmem:[%s3 + $0x110] sm:$0xff]
        %v1173 = vld [vmem:[%s3 + $0x118] sm:$0xff]
        %v1174 = vld [vmem:[%s3 + $0x120] sm:$0xff]
        %v1175 = vld [vmem:[%s3 + $0x128] sm:$0xff]
        %v1176 = vld [vmem:[%s3 + $0x130] sm:$0xff]
        %v1177 = vld [vmem:[%s3 + $0x138] sm:$0xff]
        %v1178 = vld [vmem:[%s3 + $0x140] sm:$0xff]
        %v1179 = vld [vmem:[%s3 + $0x148] sm:$0xff]
        %v1180 = vld [vmem:[%s3 + $0x150] sm:$0xff]
        %v1181 = vld [vmem:[%s3 + $0x158] sm:$0xff]
        %v1182 = vld [vmem:[%s3 + $0x160] sm:$0xff]
        %v1183 = vld [vmem:[%s3 + $0x168] sm:$0xff]
        %v1184 = vld [vmem:[%s3 + $0x170] sm:$0xff]
        %v1185 = vld [vmem:[%s3 + $0x178] sm:$0xff]
        %v1186 = vld [vmem:[%s3 + $0x180] sm:$0xff]
        %v1187 = vld [vmem:[%s3 + $0x188] sm:$0xff]
        %v1188 = vld [vmem:[%s3 + $0x190] sm:$0xff]
        %v1189 = vld [vmem:[%s3 + $0x198] sm:$0xff]
        %v1190 = vld [vmem:[%s3 + $0x1a0] sm:$0xff]
        %v1191 = vld [vmem:[%s3 + $0x1a8] sm:$0xff]
        %v1192 = vld [vmem:[%s3 + $0x1b0] sm:$0xff]
        %v1193 = vld [vmem:[%s3 + $0x1b8] sm:$0xff]
        %v1194 = vld [vmem:[%s3 + $0x1c0] sm:$0xff]
        %v1195 = vld [vmem:[%s3 + $0x1c8] sm:$0xff]
        %v1196 = vld [vmem:[%s3 + $0x1d0] sm:$0xff]
        %v1197 = vld [vmem:[%s3 + $0x1d8] sm:$0xff]
        %v1198 = vld [vmem:[%s3 + $0x1e0] sm:$0xff]
        %v1199 = vld [vmem:[%s3 + $0x1e8] sm:$0xff]
        %v1200 = vld [vmem:[%s3 + $0x1f0] sm:$0xff]
        %v1201 = vld [vmem:[%s3 + $0x1f8] sm:$0xff]
        %v1202 = vld [vmem:[%s3 + $0x200] sm:$0xff]
        %v1203 = vld [vmem:[%s3 + $0x208] sm:$0xff]
        %v1204 = vld [vmem:[%s3 + $0x210] sm:$0xff]
        %v1205 = vld [vmem:[%s3 + $0x218] sm:$0xff]
        %v1206 = vld [vmem:[%s3 + $0x220] sm:$0xff]
        %v1207 = vld [vmem:[%s3 + $0x228] sm:$0xff]
        %v1208 = vld [vmem:[%s3 + $0x230] sm:$0xff]
        %v1209 = vld [vmem:[%s3 + $0x238] sm:$0xff]
        %v1210 = vld [vmem:[%s3 + $0x240] sm:$0xff]
        %v1211 = vld [vmem:[%s3 + $0x248] sm:$0xff]
        %v1212 = vld [vmem:[%s3 + $0x250] sm:$0xff]
        %v1213 = vld [vmem:[%s3 + $0x258] sm:$0xff]
        %v1214 = vld [vmem:[%s3 + $0x260] sm:$0xff]
        %v1215 = vld [vmem:[%s3 + $0x268] sm:$0xff]
        %v1216 = vld [vmem:[%s3 + $0x270] sm:$0xff]
        %v1217 = vld [vmem:[%s3 + $0x278] sm:$0xff]
        %v1218 = vld [vmem:[%s3 + $0x280] sm:$0xff]
        %v1219 = vld [vmem:[%s3 + $0x288] sm:$0xff]
        %v1220 = vld [vmem:[%s3 + $0x290] sm:$0xff]
        %v1221 = vld [vmem:[%s3 + $0x298] sm:$0xff]
        %v1222 = vld [vmem:[%s3 + $0x2a0] sm:$0xff]
        %v1223 = vld [vmem:[%s3 + $0x2a8] sm:$0xff]
        %v1224 = vld [vmem:[%s3 + $0x2b0] sm:$0xff]
        %v1225 = vld [vmem:[%s3 + $0x2b8] sm:$0xff]
        %v1226 = vld [vmem:[%s3 + $0x2c0] sm:$0xff]
        %v1227 = vld [vmem:[%s3 + $0x2c8] sm:$0xff]
        %v1228 = vld [vmem:[%s3 + $0x2d0] sm:$0xff]
        %v1229 = vld [vmem:[%s3 + $0x2d8] sm:$0xff]
        %v1230 = vld [vmem:[%s3 + $0x2e0] sm:$0xff]
        %v1231 = vld [vmem:[%s3 + $0x2e8] sm:$0xff]
        %v1232 = vld [vmem:[%s3 + $0x2f0] sm:$0xff]
        %v1233 = vld [vmem:[%s3 + $0x2f8] sm:$0xff]
        %v1234 = vld [vmem:[%s3 + $0x300] sm:$0xff]
        %v1235 = vld [vmem:[%s3 + $0x308] sm:$0xff]
        %v1236 = vld [vmem:[%s3 + $0x310] sm:$0xff]
        %v1237 = vld [vmem:[%s3 + $0x318] sm:$0xff]
        %v1238 = vld [vmem:[%s3 + $0x320] sm:$0xff]
        %v1239 = vld [vmem:[%s3 + $0x328] sm:$0xff]
        %v1240 = vld [vmem:[%s3 + $0x330] sm:$0xff]
        %v1241 = vld [vmem:[%s3 + $0x338] sm:$0xff]
        %v1242 = vld [vmem:[%s3 + $0x340] sm:$0xf]
        %v1243 = vld [vmem:[%s3 + $0x348] sm:$0xf]
        %v1244 = vld [vmem:[%s4] sm:$0x3]
        %v1246 = vlaneseq
        %v1247 = vshrl.u32 %v1246, 7
        %v1248 = vsub.s32 0, %v1247
        %v1249 = vrot.slane %v1244, %v1248
        %v1250 = vlaneseq
        %v1251 = vshrl.u32 %v1250, 7
        %v1252 = vsub.s32 1, %v1251
        %v1253 = vrot.slane %v1244, %v1252
        %v1256 = vsel %vm1021, %v1121, 0
        %v1258 = vsel %vm1021, %v1123, 0
        %v1261 = vsel %vm452, %v1242, 0
        %v1264 = vsel %vm452, %v1243, 0
        %1266 = vmatprep.subr.mxu0 %v1139
        %1267 = vmatpush1.msra.mxu0 %v1138
        %1268 = vmatprep.subr.mxu0 %v1141
        %1269 = vmatpush1.msra.mxu0 %v1140
        %1270 = vmatprep.subr.mxu0 %v1143
        %1271 = vmatpush1.msra.mxu0 %v1142
        %1272 = vmatprep.subr.mxu0 %v1145
        %1273 = vmatpush1.msra.mxu0 %v1144
        %1274 = vmatprep.subr.mxu0 %v1147
        %1275 = vmatpush1.msra.mxu0 %v1146
        %1276 = vmatprep.subr.mxu0 %v1149
        %1277 = vmatpush1.msra.mxu0 %v1148
        %1278 = vmatprep.subr.mxu0 %v1151
        %1279 = vmatpush1.msra.mxu0 %v1150
        %1280 = vmatprep.subr.mxu0 %v1153
        %1281 = vmatpush1.msra.mxu0 %v1152
        %1282 = vmatprep.subr.mxu0 %v1155
        %1283 = vmatpush1.msra.mxu0 %v1154
        %1284 = vmatprep.subr.mxu0 %v1157
        %1285 = vmatpush1.msra.mxu0 %v1156
        %1286 = vmatprep.subr.mxu0 %v1159
        %1287 = vmatpush1.msra.mxu0 %v1158
        %1288 = vmatprep.subr.mxu0 %v1161
        %1289 = vmatpush1.msra.mxu0 %v1160
        %1290 = vmatprep.subr.mxu0 %v1163
        %1291 = vmatpush1.msra.mxu0 %v1162
        %1292 = vmatprep.subr.mxu0 %v1165
        %1293 = vmatpush1.msra.mxu0 %v1164
        %1294 = vmatprep.subr.mxu0 %v1167
        %1295 = vmatpush1.msra.mxu0 %v1166
        %1296 = vmatprep.subr.mxu0 %v1169
        %1297 = vmatpush1.msra.mxu0 %v1168
        %1298 = vmatprep.subr.mxu0 %v1171
        %1299 = vmatpush1.msra.mxu0 %v1170
        %1300 = vmatprep.subr.mxu0 %v1173
        %1301 = vmatpush1.msra.mxu0 %v1172
        %1302 = vmatprep.subr.mxu0 %v1175
        %1303 = vmatpush1.msra.mxu0 %v1174
        %1304 = vmatprep.subr.mxu0 %v1177
        %1305 = vmatpush1.msra.mxu0 %v1176
        %1306 = vmatprep.subr.mxu0 %v1179
        %1307 = vmatpush1.msra.mxu0 %v1178
        %1308 = vmatprep.subr.mxu0 %v1181
        %1309 = vmatpush1.msra.mxu0 %v1180
        %1310 = vmatprep.subr.mxu0 %v1183
        %1311 = vmatpush1.msra.mxu0 %v1182
        %1312 = vmatprep.subr.mxu0 %v1185
        %1313 = vmatpush1.msra.mxu0 %v1184
        %1314 = vmatprep.subr.mxu0 %v1187
        %1315 = vmatpush1.msra.mxu0 %v1186
        %1316 = vmatprep.subr.mxu0 %v1189
        %1317 = vmatpush1.msra.mxu0 %v1188
        %1318 = vmatprep.subr.mxu0 %v1191
        %1319 = vmatpush1.msra.mxu0 %v1190
        %1320 = vmatprep.subr.mxu0 %v1193
        %1321 = vmatpush1.msra.mxu0 %v1192
        %1322 = vmatprep.subr.mxu0 %v1195
        %1323 = vmatpush1.msra.mxu0 %v1194
        %1324 = vmatprep.subr.mxu0 %v1197
        %1325 = vmatpush1.msra.mxu0 %v1196
        %1326 = vmatprep.subr.mxu0 %v1199
        %1327 = vmatpush1.msra.mxu0 %v1198
        %1328 = vmatprep.subr.mxu0 %v1201
        %1329 = vmatpush1.msra.mxu0 %v1200
        %1330 = vmatprep.mubr.f32.mxu0 %v1133
        %1331 = vmatmul.mubr.f32.gmra.mrb[0].mxu0 %v1127
        %v1332 = vpop.f32.mrb[0].mxu0
        %v1333 = vadd.f32 %v1249, %v1332
        %v1334 = vpop.f32.mrb[0].mxu0
        %v1335 = vadd.f32 %v1253, %v1334
        %1336 = vmatprep.mubr.f32.mxu0 %v1134
        %1337 = vmatmul.mubr.f32.gmra.mrb[0].mxu0 %v1128
        %v1338 = vpop.f32.mrb[0].mxu0
        %v1339 = vadd.f32 %v1249, %v1338
        %v1340 = vpop.f32.mrb[0].mxu0
        %v1341 = vadd.f32 %v1253, %v1340
        %1342 = vdwg.mxu0
        %1343 = vmatprep.subr.mxu0 %v1203
        %1344 = vmatpush1.msra.mxu0 %v1202
        %1345 = vmatprep.subr.mxu0 %v1205
        %1346 = vmatpush1.msra.mxu0 %v1204
        %1347 = vmatprep.subr.mxu0 %v1207
        %1348 = vmatpush1.msra.mxu0 %v1206
        %1349 = vmatprep.subr.mxu0 %v1209
        %1350 = vmatpush1.msra.mxu0 %v1208
        %1351 = vmatprep.subr.mxu0 %v1211
        %1352 = vmatpush1.msra.mxu0 %v1210
        %1353 = vmatprep.subr.mxu0 %v1213
        %1354 = vmatpush1.msra.mxu0 %v1212
        %1355 = vmatprep.subr.mxu0 %v1215
        %1356 = vmatpush1.msra.mxu0 %v1214
        %1357 = vmatprep.subr.mxu0 %v1217
        %1358 = vmatpush1.msra.mxu0 %v1216
        %1359 = vmatprep.subr.mxu0 %v1219
        %1360 = vmatpush1.msra.mxu0 %v1218
        %1361 = vmatprep.subr.mxu0 %v1221
        %1362 = vmatpush1.msra.mxu0 %v1220
        %1363 = vmatprep.subr.mxu0 %v1223
        %1364 = vmatpush1.msra.mxu0 %v1222
        %1365 = vmatprep.subr.mxu0 %v1225
        %1366 = vmatpush1.msra.mxu0 %v1224
        %1367 = vmatprep.subr.mxu0 %v1227
        %1368 = vmatpush1.msra.mxu0 %v1226
        %1369 = vmatprep.subr.mxu0 %v1229
        %1370 = vmatpush1.msra.mxu0 %v1228
        %1371 = vmatprep.subr.mxu0 %v1231
        %1372 = vmatpush1.msra.mxu0 %v1230
        %1373 = vmatprep.subr.mxu0 %v1233
        %1374 = vmatpush1.msra.mxu0 %v1232
        %1375 = vmatprep.subr.mxu0 %v1235
        %1376 = vmatpush1.msra.mxu0 %v1234
        %1377 = vmatprep.subr.mxu0 %v1237
        %1378 = vmatpush1.msra.mxu0 %v1236
        %1379 = vmatprep.subr.mxu0 %v1239
        %1380 = vmatpush1.msra.mxu0 %v1238
        %1381 = vmatprep.subr.mxu0 %v1241
        %1382 = vmatpush1.msra.mxu0 %v1240
        %1383 = vmatprep.subr.mxu0 %v1264
        %1384 = vmatpush1.msra.mxu0 %v1261
        %1385 = vmatprep.subr.mxu0 0.0
        %1386 = vmatpush1.msra.mxu0 0.0
        %1387 = vmatprep.subr.mxu0 0.0
        %1388 = vmatpush1.msra.mxu0 0.0
        %1389 = vmatprep.subr.mxu0 0.0
        %1390 = vmatpush1.msra.mxu0 0.0
        %1391 = vmatprep.subr.mxu0 0.0
        %1392 = vmatpush1.msra.mxu0 0.0
        %1393 = vmatprep.subr.mxu0 0.0
        %1394 = vmatpush1.msra.mxu0 0.0
        %1395 = vmatprep.subr.mxu0 0.0
        %1396 = vmatpush1.msra.mxu0 0.0
        %1397 = vmatprep.subr.mxu0 0.0
        %1398 = vmatpush1.msra.mxu0 0.0
        %1399 = vmatprep.subr.mxu0 0.0
        %1400 = vmatpush1.msra.mxu0 0.0
        %1401 = vmatprep.subr.mxu0 0.0
        %1402 = vmatpush1.msra.mxu0 0.0
        %1403 = vmatprep.subr.mxu0 0.0
        %1404 = vmatpush1.msra.mxu0 0.0
        %1405 = vmatprep.subr.mxu0 0.0
        %1406 = vmatpush1.msra.mxu0 0.0
        %1407 = vmatprep.mubr.f32.mxu0 %v1256
        %1408 = vmatmul.mubr.f32.gmra.mrb[0].mxu0 %v1136
        %v1409 = vpop.f32.mrb[0].mxu0
        %v1410 = vadd.f32 %v1333, %v1409
        %v1411 = vpop.f32.mrb[0].mxu0
        %v1412 = vadd.f32 %v1335, %v1411
        %1413 = vmatprep.mubr.f32.mxu0 %v1258
        %1414 = vmatmul.mubr.f32.gmra.mrb[0].mxu0 %v1137
        %v1415 = vpop.f32.mrb[0].mxu0
        %v1416 = vadd.f32 %v1339, %v1415
        %v1417 = vpop.f32.mrb[0].mxu0
        %v1418 = vadd.f32 %v1341, %v1417
        %1419 = vdwg.mxu0
        %v1420 = vmax.f32 %v1410, 0.0
        %v1421 = vmax.f32 %v1412, 0.0
        %v1422 = vmax.f32 %v1416, 0.0
        %v1423 = vmax.f32 %v1418, 0.0
        %v1426 = vrot.slane %v1420, 1
        %v1427 = vrot.slane %v1421, 1
        %v1430 = vrot.slane %v1420, 2
        %v1431 = vrot.slane %v1421, 2
        %v1434 = vrot.slane %v1420, 3
        %v1435 = vrot.slane %v1421, 3
        %v1440 = vrot.slane %v1422, 4
        %v1441 = vrot.slane %v1423, 4
        %v1444 = vsel %vm857, %v1420, %v1426
        %v1445 = vsel %vm857, %v1421, %v1427
        %v1446 = vsel %vm860, %v1444, %v1430
        %v1447 = vsel %vm860, %v1445, %v1431
        %v1448 = vsel %vm863, %v1446, %v1434
        %v1449 = vsel %vm863, %v1447, %v1435
        %v1450 = vsel %vm452, %v1448, %v1440
        %v1451 = vsel %vm452, %v1449, %v1441
        %v1452 = vrot.slane %v1420, 4
        %v1453 = vrot.slane %v1421, 4
        %v1456 = vrot.slane %v1422, 5
        %v1457 = vrot.slane %v1423, 5
        %v1460 = vsel %vm857, %v1426, %v1430
        %v1461 = vsel %vm857, %v1427, %v1431
        %v1462 = vsel %vm860, %v1460, %v1434
        %v1463 = vsel %vm860, %v1461, %v1435
        %v1464 = vsel %vm863, %v1462, %v1452
        %v1465 = vsel %vm863, %v1463, %v1453
        %v1466 = vsel %vm452, %v1464, %v1456
        %v1467 = vsel %vm452, %v1465, %v1457
        %v1468 = vmax.f32 %v1450, %v1466
        %v1469 = vmax.f32 %v1451, %v1467
        %1471 = vrot.lane.b32.xlu0 %v1468, 112
        %v1472 = vpop.permute.xlu0 %1471
        %1474 = vrot.lane.b32.xlu0 %v1468, 96
        %v1475 = vpop.permute.xlu0 %1474
        %1477 = vrot.lane.b32.xlu0 %v1468, 80
        %v1478 = vpop.permute.xlu0 %1477
        %1481 = vrot.lane.b32.xlu0 %v1469, 64
        %v1482 = vpop.permute.xlu0 %1481
        %vm1484 = vcmask 130048
        %v1485 = vsel %vm1484, %v1468, %v1472
        %v1486 = vsel %vm470, %v1485, %v1475
        %v1487 = vsel %vm1027, %v1486, %v1478
        %v1488 = vsel %vm465, %v1487, %v1482
        %1489 = vrot.lane.b32.xlu0 %v1468, 64
        %v1490 = vpop.permute.xlu0 %1489
        %1492 = vrot.lane.b32.xlu0 %v1469, 48
        %v1493 = vpop.permute.xlu0 %1492
        %v1495 = vsel %vm1484, %v1472, %v1475
        %v1496 = vsel %vm470, %v1495, %v1478
        %v1497 = vsel %vm1027, %v1496, %v1490
        %v1498 = vsel %vm465, %v1497, %v1493
        %v1499 = vmax.f32 %v1488, %v1498
        %v1501 = vrot.slane %v1499, 1
        %1502 = vrot.lane.b32.xlu0 %v1501, 80
        %v1503 = vpop.permute.xlu0 %1502
        %v1505 = vrot.slane %v1499, 2
        %1506 = vrot.lane.b32.xlu0 %v1505, 32
        %v1507 = vpop.permute.xlu0 %1506
        %v1509 = vrot.slane %v1499, 3
        %1510 = vrot.lane.b32.xlu0 %v1509, 112
        %v1511 = vpop.permute.xlu0 %1510
        %v1513 = vrot.slane %v1499, 4
        %1514 = vrot.lane.b32.xlu0 %v1513, 64
        %v1515 = vpop.permute.xlu0 %1514
        %v1517 = vsel %vm1135, %v1499, %v1503
        %v1518 = vsel %vm470, %v1503, %v1507
        %vm1519 = vcmask 916480
        %v1520 = vsel %vm1519, %v1518, %v1511
        %v1521 = vsel %vm465, %v1511, %v1515
        %v1522 = vld [vmem:[%s5] sm:$0xff]
        %v1523 = vld [vmem:[%s5 + $0x8] sm:$0xff]
        %v1524 = vld [vmem:[%s5 + $0x10] sm:$0xff]
        %v1525 = vld [vmem:[%s5 + $0x18] sm:$0xff]
        %v1526 = vld [vmem:[%s5 + $0x20] sm:$0xff]
        %v1527 = vld [vmem:[%s5 + $0x28] sm:$0xff]
        %v1528 = vld [vmem:[%s5 + $0x30] sm:$0xff]
        %v1529 = vld [vmem:[%s5 + $0x38] sm:$0xff]
        %v1530 = vld [vmem:[%s5 + $0x40] sm:$0xff]
        %v1531 = vld [vmem:[%s5 + $0x48] sm:$0xff]
        %v1532 = vld [vmem:[%s5 + $0x50] sm:$0xff]
        %v1533 = vld [vmem:[%s5 + $0x58] sm:$0xff]
        %v1534 = vld [vmem:[%s5 + $0x60] sm:$0xff]
        %v1535 = vld [vmem:[%s5 + $0x68] sm:$0xff]
        %v1536 = vld [vmem:[%s5 + $0x70] sm:$0xff]
        %v1537 = vld [vmem:[%s5 + $0x78] sm:$0xff]
        %v1538 = vld [vmem:[%s5 + $0x80] sm:$0xff]
        %v1539 = vld [vmem:[%s5 + $0x88] sm:$0xff]
        %v1540 = vld [vmem:[%s5 + $0x90] sm:$0xff]
        %v1541 = vld [vmem:[%s5 + $0x98] sm:$0xff]
        %v1542 = vld [vmem:[%s5 + $0xa0] sm:$0xff]
        %v1543 = vld [vmem:[%s5 + $0xa8] sm:$0xff]
        %v1544 = vld [vmem:[%s5 + $0xb0] sm:$0xff]
        %v1545 = vld [vmem:[%s5 + $0xb8] sm:$0xff]
        %v1546 = vld [vmem:[%s5 + $0xc0] sm:$0xff]
        %v1547 = vld [vmem:[%s5 + $0xc8] sm:$0xff]
        %v1548 = vld [vmem:[%s5 + $0xd0] sm:$0xff]
        %v1549 = vld [vmem:[%s5 + $0xd8] sm:$0xff]
        %v1550 = vld [vmem:[%s5 + $0xe0] sm:$0xff]
        %v1551 = vld [vmem:[%s5 + $0xe8] sm:$0xff]
        %v1552 = vld [vmem:[%s5 + $0xf0] sm:$0xff]
        %v1553 = vld [vmem:[%s5 + $0xf8] sm:$0xff]
        %v1554 = vld [vmem:[%s5 + $0x100] sm:$0xff]
        %v1555 = vld [vmem:[%s5 + $0x108] sm:$0xff]
        %v1556 = vld [vmem:[%s5 + $0x110] sm:$0xff]
        %v1557 = vld [vmem:[%s5 + $0x118] sm:$0xff]
        %v1558 = vld [vmem:[%s5 + $0x120] sm:$0xff]
        %v1559 = vld [vmem:[%s5 + $0x128] sm:$0xff]
        %v1560 = vld [vmem:[%s5 + $0x130] sm:$0xff]
        %v1561 = vld [vmem:[%s5 + $0x138] sm:$0xff]
        %v1562 = vld [vmem:[%s5 + $0x140] sm:$0xff]
        %v1563 = vld [vmem:[%s5 + $0x148] sm:$0xff]
        %v1564 = vld [vmem:[%s5 + $0x150] sm:$0xff]
        %v1565 = vld [vmem:[%s5 + $0x158] sm:$0xff]
        %v1566 = vld [vmem:[%s5 + $0x160] sm:$0xff]
        %v1567 = vld [vmem:[%s5 + $0x168] sm:$0xff]
        %v1568 = vld [vmem:[%s5 + $0x170] sm:$0xff]
        %v1569 = vld [vmem:[%s5 + $0x178] sm:$0xff]
        %v1570 = vld [vmem:[%s5 + $0x180] sm:$0xff]
        %v1571 = vld [vmem:[%s5 + $0x188] sm:$0xff]
        %v1572 = vld [vmem:[%s6] sm:$0x1]
        %v1573 = vsel %vm1484, %v1515, 0
        %1575 = vmatprep.subr.mxu0 0.0
        %1576 = vmatpush1.msra.mxu0 %v1522
        %1577 = vmatprep.subr.mxu0 0.0
        %1578 = vmatpush1.msra.mxu0 %v1523
        %1579 = vmatprep.subr.mxu0 0.0
        %1580 = vmatpush1.msra.mxu0 %v1524
        %1581 = vmatprep.subr.mxu0 0.0
        %1582 = vmatpush1.msra.mxu0 %v1525
        %1583 = vmatprep.subr.mxu0 0.0
        %1584 = vmatpush1.msra.mxu0 %v1526
        %1585 = vmatprep.subr.mxu0 0.0
        %1586 = vmatpush1.msra.mxu0 %v1527
        %1587 = vmatprep.subr.mxu0 0.0
        %1588 = vmatpush1.msra.mxu0 %v1528
        %1589 = vmatprep.subr.mxu0 0.0
        %1590 = vmatpush1.msra.mxu0 %v1529
        %1591 = vmatprep.subr.mxu0 0.0
        %1592 = vmatpush1.msra.mxu0 %v1530
        %1593 = vmatprep.subr.mxu0 0.0
        %1594 = vmatpush1.msra.mxu0 %v1531
        %1595 = vmatprep.subr.mxu0 0.0
        %1596 = vmatpush1.msra.mxu0 %v1532
        %1597 = vmatprep.subr.mxu0 0.0
        %1598 = vmatpush1.msra.mxu0 %v1533
        %1599 = vmatprep.subr.mxu0 0.0
        %1600 = vmatpush1.msra.mxu0 %v1534
        %1601 = vmatprep.subr.mxu0 0.0
        %1602 = vmatpush1.msra.mxu0 %v1535
        %1603 = vmatprep.subr.mxu0 0.0
        %1604 = vmatpush1.msra.mxu0 %v1536
        %1605 = vmatprep.subr.mxu0 0.0
        %1606 = vmatpush1.msra.mxu0 %v1537
        %1607 = vmatprep.subr.mxu0 0.0
        %1608 = vmatpush1.msra.mxu0 %v1538
        %1609 = vmatprep.subr.mxu0 0.0
        %1610 = vmatpush1.msra.mxu0 %v1539
        %1611 = vmatprep.subr.mxu0 0.0
        %1612 = vmatpush1.msra.mxu0 %v1540
        %1613 = vmatprep.subr.mxu0 0.0
        %1614 = vmatpush1.msra.mxu0 %v1541
        %1615 = vmatprep.subr.mxu0 0.0
        %1616 = vmatpush1.msra.mxu0 %v1542
        %1617 = vmatprep.subr.mxu0 0.0
        %1618 = vmatpush1.msra.mxu0 %v1543
        %1619 = vmatprep.subr.mxu0 0.0
        %1620 = vmatpush1.msra.mxu0 %v1544
        %1621 = vmatprep.subr.mxu0 0.0
        %1622 = vmatpush1.msra.mxu0 %v1545
        %1623 = vmatprep.subr.mxu0 0.0
        %1624 = vmatpush1.msra.mxu0 %v1546
        %1625 = vmatprep.subr.mxu0 0.0
        %1626 = vmatpush1.msra.mxu0 %v1547
        %1627 = vmatprep.subr.mxu0 0.0
        %1628 = vmatpush1.msra.mxu0 %v1548
        %1629 = vmatprep.subr.mxu0 0.0
        %1630 = vmatpush1.msra.mxu0 %v1549
        %1631 = vmatprep.subr.mxu0 0.0
        %1632 = vmatpush1.msra.mxu0 %v1550
        %1633 = vmatprep.subr.mxu0 0.0
        %1634 = vmatpush1.msra.mxu0 %v1551
        %1635 = vmatprep.subr.mxu0 0.0
        %1636 = vmatpush1.msra.mxu0 %v1552
        %1637 = vmatprep.subr.mxu0 0.0
        %1638 = vmatpush1.msra.mxu0 %v1553
        %1639 = vmatprep.mubr.f32.mxu0 %v1520
        %1640 = vmatmul.mubr.f32.gmra.mrb[0].mxu0 %v1517
        %v1641 = vpop.f32.mrb[0].mxu0
        %v1642 = vadd.f32 %v1572, %v1641
        %v1643 = vpop.f32.mrb[0].mxu0
        %1644 = vdwg.mxu0
        %1645 = vmatprep.subr.mxu0 0.0
        %1646 = vmatpush1.msra.mxu0 %v1554
        %1647 = vmatprep.subr.mxu0 0.0
        %1648 = vmatpush1.msra.mxu0 %v1555
        %1649 = vmatprep.subr.mxu0 0.0
        %1650 = vmatpush1.msra.mxu0 %v1556
        %1651 = vmatprep.subr.mxu0 0.0
        %1652 = vmatpush1.msra.mxu0 %v1557
        %1653 = vmatprep.subr.mxu0 0.0
        %1654 = vmatpush1.msra.mxu0 %v1558
        %1655 = vmatprep.subr.mxu0 0.0
        %1656 = vmatpush1.msra.mxu0 %v1559
        %1657 = vmatprep.subr.mxu0 0.0
        %1658 = vmatpush1.msra.mxu0 %v1560
        %1659 = vmatprep.subr.mxu0 0.0
        %1660 = vmatpush1.msra.mxu0 %v1561
        %1661 = vmatprep.subr.mxu0 0.0
        %1662 = vmatpush1.msra.mxu0 %v1562
        %1663 = vmatprep.subr.mxu0 0.0
        %1664 = vmatpush1.msra.mxu0 %v1563
        %1665 = vmatprep.subr.mxu0 0.0
        %1666 = vmatpush1.msra.mxu0 %v1564
        %1667 = vmatprep.subr.mxu0 0.0
        %1668 = vmatpush1.msra.mxu0 %v1565
        %1669 = vmatprep.subr.mxu0 0.0
        %1670 = vmatpush1.msra.mxu0 %v1566
        %1671 = vmatprep.subr.mxu0 0.0
        %1672 = vmatpush1.msra.mxu0 %v1567
        %1673 = vmatprep.subr.mxu0 0.0
        %1674 = vmatpush1.msra.mxu0 %v1568
        %1675 = vmatprep.subr.mxu0 0.0
        %1676 = vmatpush1.msra.mxu0 %v1569
        %1677 = vmatprep.subr.mxu0 0.0
        %1678 = vmatpush1.msra.mxu0 %v1570
        %1679 = vmatprep.subr.mxu0 0.0
        %1680 = vmatpush1.msra.mxu0 %v1571
        %1681 = vmatprep.subr.mxu0 0.0
        %1682 = vmatpush1.msra.mxu0 0.0
        %1683 = vmatprep.subr.mxu0 0.0
        %1684 = vmatpush1.msra.mxu0 0.0
        %1685 = vmatprep.subr.mxu0 0.0
        %1686 = vmatpush1.msra.mxu0 0.0
        %1687 = vmatprep.subr.mxu0 0.0
        %1688 = vmatpush1.msra.mxu0 0.0
        %1689 = vmatprep.subr.mxu0 0.0
        %1690 = vmatpush1.msra.mxu0 0.0
        %1691 = vmatprep.subr.mxu0 0.0
        %1692 = vmatpush1.msra.mxu0 0.0
        %1693 = vmatprep.subr.mxu0 0.0
        %1694 = vmatpush1.msra.mxu0 0.0
        %1695 = vmatprep.subr.mxu0 0.0
        %1696 = vmatpush1.msra.mxu0 0.0
        %1697 = vmatprep.subr.mxu0 0.0
        %1698 = vmatpush1.msra.mxu0 0.0
        %1699 = vmatprep.subr.mxu0 0.0
        %1700 = vmatpush1.msra.mxu0 0.0
        %1701 = vmatprep.subr.mxu0 0.0
        %1702 = vmatpush1.msra.mxu0 0.0
        %1703 = vmatprep.subr.mxu0 0.0
        %1704 = vmatpush1.msra.mxu0 0.0
        %1705 = vmatprep.subr.mxu0 0.0
        %1706 = vmatpush1.msra.mxu0 0.0
        %1707 = vmatprep.subr.mxu0 0.0
        %1708 = vmatpush1.msra.mxu0 0.0
        %1709 = vmatprep.mubr.f32.mxu0 %v1573
        %1710 = vmatmul.mubr.f32.gmra.mrb[0].mxu0 %v1521
        %v1711 = vpop.f32.mrb[0].mxu0
        %v1712 = vadd.f32 %v1642, %v1711
        %v1713 = vpop.f32.mrb[0].mxu0
        %1714 = vdwg.mxu0
        %v1715 = vmax.f32 %v1712, 0.0
        %v1716 = vld [vmem:[%s7] sm:$0xff]
        %v1717 = vld [vmem:[%s7 + $0x8] sm:$0xff]
        %v1718 = vld [vmem:[%s7 + $0x10] sm:$0xff]
        %v1719 = vld [vmem:[%s7 + $0x18] sm:$0xff]
        %v1720 = vld [vmem:[%s7 + $0x20] sm:$0xff]
        %v1721 = vld [vmem:[%s7 + $0x28] sm:$0xff]
        %v1722 = vld [vmem:[%s7 + $0x30] sm:$0xff]
        %v1723 = vld [vmem:[%s7 + $0x38] sm:$0xff]
        %v1724 = vld [vmem:[%s7 + $0x40] sm:$0xff]
        %v1725 = vld [vmem:[%s7 + $0x48] sm:$0xff]
        %v1726 = vld [vmem:[%s7 + $0x50] sm:$0xff]
        %v1727 = vld [vmem:[%s7 + $0x58] sm:$0xff]
        %v1728 = vld [vmem:[%s7 + $0x60] sm:$0xff]
        %v1729 = vld [vmem:[%s7 + $0x68] sm:$0xff]
        %v1730 = vld [vmem:[%s7 + $0x70] sm:$0xff]
        %v1731 = vld [vmem:[%s7 + $0x78] sm:$0xff]
        %v1732 = vld [vmem:[%s8] sm:$0x1]
        %1733 = vmatprep.subr.mxu0 0.0
        %1734 = vmatpush1.msra.mxu0 %v1716
        %1735 = vmatprep.subr.mxu0 0.0
        %1736 = vmatpush1.msra.mxu0 %v1717
        %1737 = vmatprep.subr.mxu0 0.0
        %1738 = vmatpush1.msra.mxu0 %v1718
        %1739 = vmatprep.subr.mxu0 0.0
        %1740 = vmatpush1.msra.mxu0 %v1719
        %1741 = vmatprep.subr.mxu0 0.0
        %1742 = vmatpush1.msra.mxu0 %v1720
        %1743 = vmatprep.subr.mxu0 0.0
        %1744 = vmatpush1.msra.mxu0 %v1721
        %1745 = vmatprep.subr.mxu0 0.0
        %1746 = vmatpush1.msra.mxu0 %v1722
        %1747 = vmatprep.subr.mxu0 0.0
        %1748 = vmatpush1.msra.mxu0 %v1723
        %1749 = vmatprep.subr.mxu0 0.0
        %1750 = vmatpush1.msra.mxu0 %v1724
        %1751 = vmatprep.subr.mxu0 0.0
        %1752 = vmatpush1.msra.mxu0 %v1725
        %1753 = vmatprep.subr.mxu0 0.0
        %1754 = vmatpush1.msra.mxu0 %v1726
        %1755 = vmatprep.subr.mxu0 0.0
        %1756 = vmatpush1.msra.mxu0 %v1727
        %1757 = vmatprep.subr.mxu0 0.0
        %1758 = vmatpush1.msra.mxu0 %v1728
        %1759 = vmatprep.subr.mxu0 0.0
        %1760 = vmatpush1.msra.mxu0 %v1729
        %1761 = vmatprep.subr.mxu0 0.0
        %1762 = vmatpush1.msra.mxu0 %v1730
        %1763 = vmatprep.subr.mxu0 0.0
        %1764 = vmatpush1.msra.mxu0 %v1731
        %1765 = vmatprep.subr.mxu0 0.0
        %1766 = vmatpush1.msra.mxu0 0.0
        %1767 = vmatprep.subr.mxu0 0.0
        %1768 = vmatpush1.msra.mxu0 0.0
        %1769 = vmatprep.subr.mxu0 0.0
        %1770 = vmatpush1.msra.mxu0 0.0
        %1771 = vmatprep.subr.mxu0 0.0
        %1772 = vmatpush1.msra.mxu0 0.0
        %1773 = vmatprep.subr.mxu0 0.0
        %1774 = vmatpush1.msra.mxu0 0.0
        %1775 = vmatprep.subr.mxu0 0.0
        %1776 = vmatpush1.msra.mxu0 0.0
        %1777 = vmatprep.subr.mxu0 0.0
        %1778 = vmatpush1.msra.mxu0 0.0
        %1779 = vmatprep.subr.mxu0 0.0
        %1780 = vmatpush1.msra.mxu0 0.0
        %1781 = vmatprep.subr.mxu0 0.0
        %1782 = vmatpush1.msra.mxu0 0.0
        %1783 = vmatprep.subr.mxu0 0.0
        %1784 = vmatpush1.msra.mxu0 0.0
        %1785 = vmatprep.subr.mxu0 0.0
        %1786 = vmatpush1.msra.mxu0 0.0
        %1787 = vmatprep.subr.mxu0 0.0
        %1788 = vmatpush1.msra.mxu0 0.0
        %1789 = vmatprep.subr.mxu0 0.0
        %1790 = vmatpush1.msra.mxu0 0.0
        %1791 = vmatprep.subr.mxu0 0.0
        %1792 = vmatpush1.msra.mxu0 0.0
        %1793 = vmatprep.subr.mxu0 0.0
        %1794 = vmatpush1.msra.mxu0 0.0
        %1795 = vmatprep.subr.mxu0 0.0
        %1796 = vmatpush1.msra.mxu0 0.0
        %1797 = vmatprep.mubr.f32.mxu0 0.0
        %1798 = vmatmul.mubr.f32.gmra.mrb[0].mxu0 %v1715
        %v1799 = vpop.f32.mrb[0].mxu0
        %v1800 = vadd.f32 %v1732, %v1799
        %v1801 = vpop.f32.mrb[0].mxu0
        %1802 = vdwg.mxu0
        %v1803 = vmax.f32 %v1800, 0.0
        %v1804 = vld [vmem:[%s9] sm:$0xff]
        %v1805 = vld [vmem:[%s9 + $0x8] sm:$0xff]
        %v1806 = vld [vmem:[%s9 + $0x10] sm:$0xff]
        %v1807 = vld [vmem:[%s9 + $0x18] sm:$0xff]
        %v1808 = vld [vmem:[%s9 + $0x20] sm:$0xff]
        %v1809 = vld [vmem:[%s9 + $0x28] sm:$0xff]
        %v1810 = vld [vmem:[%s9 + $0x30] sm:$0xff]
        %v1811 = vld [vmem:[%s9 + $0x38] sm:$0xff]
        %v1812 = vld [vmem:[%s9 + $0x40] sm:$0xff]
        %v1813 = vld [vmem:[%s9 + $0x48] sm:$0xff]
        %v1814 = vld [vmem:[%s9 + $0x50] sm:$0xff]
        %v1815 = vld [vmem:[%s9 + $0x58] sm:$0xff]
        %v1816 = vld [vmem:[%s9 + $0x60] sm:$0xff]
        %v1817 = vld [vmem:[%s9 + $0x68] sm:$0xff]
        %v1818 = vld [vmem:[%s9 + $0x70] sm:$0xff]
        %v1819 = vld [vmem:[%s9 + $0x78] sm:$0xff]
        %v1820 = vld [vmem:[%s10] sm:$0x1]
        %1821 = vmatprep.subr.mxu0 0.0
        %1822 = vmatpush1.msra.mxu0 %v1804
        %1823 = vmatprep.subr.mxu0 0.0
        %1824 = vmatpush1.msra.mxu0 %v1805
        %1825 = vmatprep.subr.mxu0 0.0
        %1826 = vmatpush1.msra.mxu0 %v1806
        %1827 = vmatprep.subr.mxu0 0.0
        %1828 = vmatpush1.msra.mxu0 %v1807
        %1829 = vmatprep.subr.mxu0 0.0
        %1830 = vmatpush1.msra.mxu0 %v1808
        %1831 = vmatprep.subr.mxu0 0.0
        %1832 = vmatpush1.msra.mxu0 %v1809
        %1833 = vmatprep.subr.mxu0 0.0
        %1834 = vmatpush1.msra.mxu0 %v1810
        %1835 = vmatprep.subr.mxu0 0.0
        %1836 = vmatpush1.msra.mxu0 %v1811
        %1837 = vmatprep.subr.mxu0 0.0
        %1838 = vmatpush1.msra.mxu0 %v1812
        %1839 = vmatprep.subr.mxu0 0.0
        %1840 = vmatpush1.msra.mxu0 %v1813
        %1841 = vmatprep.subr.mxu0 0.0
        %1842 = vmatpush1.msra.mxu0 %v1814
        %1843 = vmatprep.subr.mxu0 0.0
        %1844 = vmatpush1.msra.mxu0 %v1815
        %1845 = vmatprep.subr.mxu0 0.0
        %1846 = vmatpush1.msra.mxu0 %v1816
        %1847 = vmatprep.subr.mxu0 0.0
        %1848 = vmatpush1.msra.mxu0 %v1817
        %1849 = vmatprep.subr.mxu0 0.0
        %1850 = vmatpush1.msra.mxu0 %v1818
        %1851 = vmatprep.subr.mxu0 0.0
        %1852 = vmatpush1.msra.mxu0 %v1819
        %1853 = vmatprep.subr.mxu0 0.0
        %1854 = vmatpush1.msra.mxu0 0.0
        %1855 = vmatprep.subr.mxu0 0.0
        %1856 = vmatpush1.msra.mxu0 0.0
        %1857 = vmatprep.subr.mxu0 0.0
        %1858 = vmatpush1.msra.mxu0 0.0
        %1859 = vmatprep.subr.mxu0 0.0
        %1860 = vmatpush1.msra.mxu0 0.0
        %1861 = vmatprep.subr.mxu0 0.0
        %1862 = vmatpush1.msra.mxu0 0.0
        %1863 = vmatprep.subr.mxu0 0.0
        %1864 = vmatpush1.msra.mxu0 0.0
        %1865 = vmatprep.subr.mxu0 0.0
        %1866 = vmatpush1.msra.mxu0 0.0
        %1867 = vmatprep.subr.mxu0 0.0
        %1868 = vmatpush1.msra.mxu0 0.0
        %1869 = vmatprep.subr.mxu0 0.0
        %1870 = vmatpush1.msra.mxu0 0.0
        %1871 = vmatprep.subr.mxu0 0.0
        %1872 = vmatpush1.msra.mxu0 0.0
        %1873 = vmatprep.subr.mxu0 0.0
        %1874 = vmatpush1.msra.mxu0 0.0
        %1875 = vmatprep.subr.mxu0 0.0
        %1876 = vmatpush1.msra.mxu0 0.0
        %1877 = vmatprep.subr.mxu0 0.0
        %1878 = vmatpush1.msra.mxu0 0.0
        %1879 = vmatprep.subr.mxu0 0.0
        %1880 = vmatpush1.msra.mxu0 0.0
        %1881 = vmatprep.subr.mxu0 0.0
        %1882 = vmatpush1.msra.mxu0 0.0
        %1883 = vmatprep.subr.mxu0 0.0
        %1884 = vmatpush1.msra.mxu0 0.0
        %1885 = vmatprep.mubr.f32.mxu0 0.0
        %1886 = vmatmul.mubr.f32.gmra.mrb[0].mxu0 %v1803
        %v1887 = vpop.f32.mrb[0].mxu0
        %v1888 = vadd.f32 %v1820, %v1887
        %v1889 = vpop.f32.mrb[0].mxu0
        %1890 = vdwg.mxu0
        %1891 = vst [vmem:[%s378] sm:$0x1] %v1888
        %s1892 = sand.u32 %s269, 1
        %s1893 = scalar_lea.sflag [#allocation3], %s1892
        %s1894 = sand.u32 %s269, 1
        %s1895 = scalar_lea.vmem [#allocation2], %s1894
        // Predicated region
        $region65: #{forward.1} parent=63 // pred_check
          %p1896 = pneg %p279
        $region66: #{forward.1} parent=63 // pred_check_branch
          %1898 = sbr.rel (%p1896) target = $region68
        $region67: #{forward.1} parent=63 // pred_region
          %s1900 = ssub.s32 16, 16
          %1901 = vsyncadd %s1893, %s1900
          %s1902 = smul.addr %s25, 16
          %s1903 = scalar_lea.hbm %s11, %s1902
          %s1905 = sshll.u32 %s1895, 4
          %s1906 = int_to_ptr.vmem [resolvable:$true] %s1905
          %1908 = dma.vmem_to_hbm [thread:$0]  %s1906, 16, %s1903, %s1893
        $region68: #{forward.1} parent=63 // pred_fallthru
          _
      $region64: #{forward.1} parent=5 // pred_fallthru
        _
      %p1909 = scmp.le.s32.totalorder 2, %s20
      // Predicated region
      $region69: #{forward.1} parent=5 // pred_check
        %p1910 = pneg %p1909
      $region70: #{forward.1} parent=5 // pred_check_branch
        %1912 = sbr.rel (%p1910) target = $region72
      $region71: #{forward.1} parent=5 // pred_region
        %s1913 = ssub.s32 %s20, 2
        // Predicated region
        $region73: #{forward.1} parent=71 // pred_check
          %p1914 = pneg %p285
        $region74: #{forward.1} parent=71 // pred_check_branch
          %1916 = sbr.rel (%p1914) target = $region76
        $region75: #{forward.1} parent=71 // pred_region
          %s1917 = sand.u32 %s270, 1
          %s1918 = scalar_lea.sflag [#allocation3], %s1917
          %s1919 = sand.u32 %s270, 1
          %s1920 = scalar_lea.vmem [#allocation2], %s1919
          %1921 = dma.done %s1918, 16
        $region76: #{forward.1} parent=71 // pred_fallthru
          _
      $region72: #{forward.1} parent=5 // pred_fallthru
        _
    $region6: #{forward.1} parent=1 // loop_footer
      %s24 = sadd.s32 1, %s20
    $region7: #{forward.1} parent=1 // loop_footer_branch
      %19 = sbr.rel target = $region3
    $region8: #{forward.1} parent=1 // loop_exit
      _
    %1922 = vsyncpa [#allocation3], 1
    %s1923 = scalar_lea.sflag [#allocation3], 1
    %1924 = vsyncpa %s1923, 1

</llo_original>
